<compile_context>
chip_gen: v7x
topology: tpu7x:2x2x1
jax: 0.10.0
libtpu: 0.0.40
codegen_flags: <defaults>
</compile_context>

<pallas_src>
import functools

import numpy as np
import jax
import jax.numpy as jnp
from jax import lax
from jax.experimental import pallas as pl
from jax.experimental.pallas import tpu as pltpu

LANE = 128                      # TPU lane width
HIDDEN = 128                    # SAGE hidden width (from the reference model)
N_CLASSES = 10                  # Model(bin=False) -> MLPPredictor(..., 10)


def _rup(x, m):
    return ((x + m - 1) // m) * m


def _pad2(x, rows, cols):
    return jnp.pad(x, ((0, rows - x.shape[0]), (0, cols - x.shape[1])))


def _tile(n, target, granule):
    """Pick (tile, padded_n) with padded_n % tile == 0 and tile % granule == 0."""
    if n <= target:
        p = max(_rup(n, granule), granule)
        return p, p
    t = _rup(target, granule)
    return t, _rup(n, t)


def _vmem_limit_bytes():
    # ~0.6x of physical VMEM: ~40 MiB on v7x (64 MiB phys), 64 MiB on v5e/v6e (128 MiB).
    try:
        cap = int(pltpu.get_tpu_info().vmem_capacity_bytes)
    except Exception:
        cap = 64 * 1024 * 1024
    return max(32 * 1024 * 1024, min(int(cap * 5 // 8), 64 * 1024 * 1024))


VMEM_LIMIT = _vmem_limit_bytes()


# ----------------------------- SAGE layer kernel -----------------------------
# Grid: (node tiles, kmax edge blocks per node tile).  Edges are sorted by dst,
# so node tile i owns a contiguous edge range; blk_tab/blk_cnt (scalar prefetch)
# tell the pipeline which edge blocks to stream for each node tile.
def _sage_layer_kernel(tab_ref, cnt_ref, he_ref, dst_ref, h_ref, invd_ref,
                       wm_ref, wa_ref, bm_ref, ba_ref, out_ref, z_ref):
    i = pl.program_id(0)
    k = pl.program_id(1)
    tn, h_out = out_ref.shape
    d_in = h_ref.shape[1]
    te = he_ref.shape[0]

    @pl.when(k == 0)
    def _():
        # z holds [h_self | neigh-accumulator]; fused node update uses it whole.
        z_ref[:, :d_in] = h_ref[...].astype(jnp.float32)
        z_ref[:, d_in:] = jnp.zeros((tn, h_out), jnp.float32)

    @pl.when(k < cnt_ref[i])
    def _():
        # Per-edge messages for this edge block -- computed once per visited
        # block (not once per node tile), no bias (folded into the epilogue).
        msg = jnp.dot(he_ref[...], wm_ref[...],
                      preferred_element_type=jnp.float32)            # (te, H) f32
        # Local segment-sum: scatter messages onto this tile's node rows via a
        # one-hot (tn, te) matmul; padded / out-of-tile edges (dst mismatch)
        # contribute nothing.
        rows = lax.broadcasted_iota(jnp.int32, (tn, te), 0) + i * tn
        sel = (rows == dst_ref[...]).astype(jnp.bfloat16)             # (tn, te)
        z_ref[:, d_in:] += jnp.dot(sel, msg.astype(jnp.bfloat16),
                                   preferred_element_type=jnp.float32)

    @pl.when(k == pl.num_programs(1) - 1)
    def _():
        invd = invd_ref[...]                                          # (tn, 1) f32
        has_edge = (invd > 0.0).astype(jnp.float32)
        # mean over incident edges; b_msg folded in here (deg-0 nodes masked).
        z_ref[:, d_in:] = z_ref[:, d_in:] * invd + has_edge * bm_ref[...]
        out = jnp.dot(z_ref[...].astype(jnp.bfloat16), wa_ref[...],
                      preferred_element_type=jnp.float32) + ba_ref[...]
        out_ref[...] = jnp.maximum(out, 0.0).astype(out_ref.dtype)


def sage_layer(blk_tab, blk_cnt, he, dst_row, h_node, inv_deg, wm, wa, bm, ba,
               tn, te, kmax):
    n_pad, d_in = h_node.shape
    e_pad, k_msg = he.shape
    h_out = wm.shape[1]
    n_tiles = n_pad // tn
    grid = (n_tiles, kmax)

    # Sparse-formulation cost: each edge block is visited ~once (+ tile boundaries).
    visited = e_pad // te + n_tiles
    flops = (2 * visited * te * (k_msg + tn) * h_out
             + 2 * n_tiles * tn * (d_in + h_out) * h_out)
    bytes_accessed = (visited * te * (k_msg * 2 + 4)
                      + n_pad * (d_in * 2 + 4 + h_out * 2)
                      + (k_msg + d_in + h_out + 2) * h_out * 4)

    he_map = lambda i, k, tab, cnt: (tab[i * kmax + k], 0)
    dst_map = lambda i, k, tab, cnt: (0, tab[i * kmax + k])
    node_map = lambda i, k, tab, cnt: (i, 0)
    const_map = lambda i, k, tab, cnt: (0, 0)

    return pl.pallas_call(
        _sage_layer_kernel,
        grid_spec=pltpu.PrefetchScalarGridSpec(
            num_scalar_prefetch=2,
            grid=grid,
            in_specs=[
                pl.BlockSpec((te, k_msg), he_map),               # [h_src, e_feat] (dst-sorted)
                pl.BlockSpec((1, te), dst_map),                  # dst node id per sorted edge
                pl.BlockSpec((tn, d_in), node_map),              # h_v
                pl.BlockSpec((tn, 1), node_map),                 # 1/deg (0 for isolated nodes)
                pl.BlockSpec((k_msg, h_out), const_map),         # W_msg ([node; edge] rows)
                pl.BlockSpec((d_in + h_out, h_out), const_map),  # W_apply ([self; neigh] rows)
                pl.BlockSpec((1, h_out), const_map),             # b_msg
                pl.BlockSpec((1, h_out), const_map),             # b_apply
            ],
            out_specs=pl.BlockSpec((tn, h_out), node_map),
            scratch_shapes=[pltpu.VMEM((tn, d_in + h_out), jnp.float32)],
        ),
        out_shape=jax.ShapeDtypeStruct((n_pad, h_out), jnp.bfloat16),
        compiler_params=pltpu.CompilerParams(
            dimension_semantics=("parallel", "arbitrary"),
            vmem_limit_bytes=VMEM_LIMIT),
        cost_estimate=pl.CostEstimate(flops=int(flops), transcendentals=0,
                                      bytes_accessed=int(bytes_accessed)),
    )(blk_tab, blk_cnt, he, dst_row, h_node, inv_deg, wm, wa, bm, ba)


# --------------------------- MLP edge-score kernel ---------------------------
def _predictor_kernel(huv_ref, w_ref, b_ref, out_ref):
    out = jnp.dot(huv_ref[...], w_ref[...],
                  preferred_element_type=jnp.float32) + b_ref[...]
    out_ref[...] = out.astype(out_ref.dtype)     # bf16, lane-dense writeback


def mlp_predictor(huv, w, b, te):
    e_pad, k = huv.shape
    c_pad = w.shape[1]
    flops = 2 * e_pad * k * c_pad
    bytes_accessed = huv.size * 2 + w.size * 2 + b.size * 4 + e_pad * c_pad * 2
    return pl.pallas_call(
        _predictor_kernel,
        grid=(e_pad // te,),
        in_specs=[
            pl.BlockSpec((te, k), lambda i: (i, 0)),       # [h_u, h_v]
            pl.BlockSpec((k, c_pad), lambda i: (0, 0)),    # W (concat, lane-padded)
            pl.BlockSpec((1, c_pad), lambda i: (0, 0)),    # bias
        ],
        out_specs=pl.BlockSpec((te, c_pad), lambda i: (i, 0)),
        out_shape=jax.ShapeDtypeStruct((e_pad, c_pad), jnp.bfloat16),
        compiler_params=pltpu.CompilerParams(
            dimension_semantics=("parallel",),
            vmem_limit_bytes=VMEM_LIMIT),
        cost_estimate=pl.CostEstimate(flops=int(flops), transcendentals=0,
                                      bytes_accessed=int(bytes_accessed)),
    )(huv, w, b)


# --------------------------------- wrapper -----------------------------------
def init_params(key, ndim_in, ndim_out, edim, n_classes=N_CLASSES, hidden=HIDDEN):
    ks = jax.random.split(key, 15)
    nrm = lambda k, shp: 0.1 * jax.random.normal(k, shp, jnp.float32)
    return {
        "layer1": {  # SAGELayer(ndim_in, edim, 128)
            "wm_n": nrm(ks[0], (ndim_in, hidden)),
            "wm_e": nrm(ks[1], (edim, hidden)),
            "bm":   nrm(ks[2], (1, hidden)),
            "wa_n": nrm(ks[3], (ndim_in, hidden)),
            "wa_h": nrm(ks[4], (hidden, hidden)),
            "ba":   nrm(ks[5], (1, hidden)),
        },
        "layer2": {  # SAGELayer(128, edim, ndim_out)
            "wm_n": nrm(ks[6], (hidden, ndim_out)),
            "wm_e": nrm(ks[7], (edim, ndim_out)),
            "bm":   nrm(ks[8], (1, ndim_out)),
            "wa_n": nrm(ks[9], (hidden, ndim_out)),
            "wa_h": nrm(ks[10], (ndim_out, ndim_out)),
            "ba":   nrm(ks[11], (1, ndim_out)),
        },
        "pred": {    # MLPPredictor(ndim_out, edim, 10)
            "w_u": nrm(ks[12], (ndim_out, n_classes)),
            "w_v": nrm(ks[13], (ndim_out, n_classes)),
            "b":   nrm(ks[14], (1, n_classes)),
        },
    }


@functools.partial(jax.jit, static_argnames=("tn", "te", "kmax"))
def _forward_core(params, h0, e0, perm, src_s, dst_gather, dst_row, inv_deg,
                  blk_tab, blk_cnt, inv_perm, *, tn, te, kmax):
    f32, bf16 = jnp.float32, jnp.bfloat16
    n, ndim_in = h0.shape
    e_cnt, edim = e0.shape
    e_pad = src_s.shape[0]
    n_pad = inv_deg.shape[0]
    hidden = params["layer1"]["wa_h"].shape[0]
    ndim_out = params["pred"]["w_u"].shape[0]

    din_p = _rup(ndim_in, LANE)
    edim_p = _rup(edim, LANE)
    hid_p = _rup(hidden, LANE)
    dout_p = _rup(ndim_out, LANE)
    c_pad = _rup(N_CLASSES, LANE)
    k1_p = _rup(ndim_in + edim, LANE)

    e0_s = jnp.take(e0, perm, axis=0)                       # edges in dst-sorted order
    e0p = _pad2(e0_s, e_pad, edim_p).astype(bf16)           # (e_pad, 128)
    h0p = _pad2(h0, n_pad, din_p).astype(bf16)              # (n_pad, 128)

    # --- SAGE layer 1 ----------------------------------------------------------
    p1 = params["layer1"]
    # TODO(synk): fuse this per-edge source gather + concat into the kernel (in-kernel
    # DMA gather over scalar-prefetched indices) instead of materializing it in HBM.
    he1 = _pad2(jnp.concatenate(
        [jnp.take(h0, src_s, axis=0),
         jnp.pad(e0_s, ((0, e_pad - e_cnt), (0, 0)))], axis=1),
        e_pad, k1_p).astype(bf16)
    wm1 = _pad2(jnp.concatenate([p1["wm_n"], p1["wm_e"]], axis=0), k1_p, hid_p).astype(bf16)
    wa1 = jnp.concatenate([_pad2(p1["wa_n"], din_p, hid_p),
                           _pad2(p1["wa_h"], hid_p, hid_p)], axis=0).astype(bf16)
    h1 = sage_layer(blk_tab, blk_cnt, he1, dst_row, h0p, inv_deg, wm1, wa1,
                    _pad2(p1["bm"], 1, hid_p), _pad2(p1["ba"], 1, hid_p),
                    tn, te, kmax)                            # (n_pad, 128) bf16

    # TODO(synk): nn.Dropout between the two SAGE layers is identity in eval mode.

    # --- SAGE layer 2 ----------------------------------------------------------
    p2 = params["layer2"]
    he2 = jnp.concatenate([jnp.take(h1, src_s, axis=0), e0p], axis=1)  # (e_pad, 256)
    wm2 = jnp.concatenate([_pad2(p2["wm_n"], hid_p, dout_p),
                           _pad2(p2["wm_e"], edim_p, dout_p)], axis=0).astype(bf16)
    wa2 = jnp.concatenate([_pad2(p2["wa_n"], hid_p, dout_p),
                           _pad2(p2["wa_h"], dout_p, dout_p)], axis=0).astype(bf16)
    h2 = sage_layer(blk_tab, blk_cnt, he2, dst_row, h1, inv_deg, wm2, wa2,
                    _pad2(p2["bm"], 1, dout_p), _pad2(p2["ba"], 1, dout_p),
                    tn, te, kmax)                            # (n_pad, 128) bf16

    # --- edge predictor (lane-padded to 128 classes, bf16 writeback) -----------
    pp = params["pred"]
    huv = jnp.concatenate([jnp.take(h2, src_s, axis=0),
                           jnp.take(h2, dst_gather, axis=0)], axis=1)   # (e_pad, 256)
    wuv = jnp.concatenate([_pad2(pp["w_u"], dout_p, c_pad),
                           _pad2(pp["w_v"], dout_p, c_pad)], axis=0).astype(bf16)
    scores_s = mlp_predictor(huv, wuv, _pad2(pp["b"], 1, c_pad), te)    # (e_pad, 128) bf16
    scores = scores_s[:e_cnt, :N_CLASSES].astype(f32)
    return jnp.take(scores, inv_perm, axis=0)               # back to original edge order


def model_forward(params, src, dst, nfeats, efeats):
    """E-GraphSAGE forward: one-time host graph preprocessing + Pallas compute."""
    h0 = jnp.squeeze(nfeats, axis=1).astype(jnp.float32)    # (N, ndim_in)
    e0 = jnp.squeeze(efeats, axis=1).astype(jnp.float32)    # (E, edim)
    n = h0.shape[0]
    e_cnt = e0.shape[0]

    tn, n_pad = _tile(n, 256, 16)           # node tile (sublane axis of h / out)
    te, e_pad = _tile(e_cnt, 2048, LANE)    # edge tile (lane axis of dst row)

    # Host preprocessing: sort edges by dst, degrees, per-node-tile block tables.
    src_np = np.asarray(jax.device_get(src)).astype(np.int32)
    dst_np = np.asarray(jax.device_get(dst)).astype(np.int32)

    perm = np.argsort(dst_np, kind="stable")
    inv_perm = np.argsort(perm).astype(np.int32)
    src_s = np.zeros((e_pad,), np.int32)
    src_s[:e_cnt] = src_np[perm]
    dst_s = dst_np[perm]
    dst_gather = np.zeros((e_pad,), np.int32)
    dst_gather[:e_cnt] = dst_s
    dst_row = np.full((1, e_pad), -1, np.int32)              # -1 => padded edge, never matches
    dst_row[0, :e_cnt] = dst_s

    counts = np.bincount(dst_np, minlength=n_pad).astype(np.int64)
    node_starts = np.concatenate([np.zeros((1,), np.int64), np.cumsum(counts)])
    inv_deg = np.where(counts > 0, 1.0 / np.maximum(counts, 1), 0.0)
    inv_deg = inv_deg.astype(np.float32).reshape(n_pad, 1)

    n_tiles = n_pad // tn
    nblk = e_pad // te
    lo_e = node_starts[np.arange(n_tiles) * tn]
    hi_e = node_starts[(np.arange(n_tiles) + 1) * tn]
    blk_lo = lo_e // te
    blk_hi = np.where(hi_e > lo_e, (hi_e - 1) // te, blk_lo)
    blk_cnt = np.where(hi_e > lo_e, blk_hi - blk_lo + 1, 0).astype(np.int32)
    kmax = int(max(int(blk_cnt.max()), 1))
    blk_tab = blk_lo[:, None] + np.arange(kmax)[None, :]
    blk_tab = np.minimum(blk_tab, np.maximum(blk_hi, blk_lo)[:, None])
    blk_tab = np.clip(blk_tab, 0, nblk - 1).astype(np.int32).reshape(-1)

    return _forward_core(params, h0, e0,
                         jnp.asarray(perm.astype(np.int32)),
                         jnp.asarray(src_s), jnp.asarray(dst_gather),
                         jnp.asarray(dst_row), jnp.asarray(inv_deg),
                         jnp.asarray(blk_tab), jnp.asarray(blk_cnt),
                         jnp.asarray(inv_perm),
                         tn=tn, te=te, kmax=kmax)


# --------------------------- pure-JAX f32 reference ---------------------------
def _reference_forward(params, src, dst, nfeats, efeats):
    h = jnp.squeeze(nfeats, 1).astype(jnp.float32)
    e = jnp.squeeze(efeats, 1).astype(jnp.float32)
    n = h.shape[0]
    onehot = (jnp.arange(n)[:, None] == dst[None, :]).astype(jnp.float32)
    deg = onehot.sum(1, keepdims=True)
    adj = onehot / jnp.maximum(deg, 1.0)
    for lp in (params["layer1"], params["layer2"]):
        msg = jnp.take(h, src, 0) @ lp["wm_n"] + e @ lp["wm_e"] + lp["bm"]
        neigh = adj @ msg
        h = jax.nn.relu(h @ lp["wa_n"] + neigh @ lp["wa_h"] + lp["ba"])
    pp = params["pred"]
    return jnp.take(h, src, 0) @ pp["w_u"] + jnp.take(h, dst, 0) @ pp["w_v"] + pp["b"]


if __name__ == "__main__":
    N, E = 8, 16
    ndim_in, edim, ndim_out = 16, 8, 16

    key = jax.random.PRNGKey(0)
    k_n, k_e, k_p = jax.random.split(key, 3)

    nfeats = jax.random.normal(k_n, (N, 1, ndim_in), jnp.float32)
    efeats = jax.random.normal(k_e, (E, 1, edim), jnp.float32)
    src = jnp.arange(E, dtype=jnp.int32) % N
    dst = (jnp.arange(E, dtype=jnp.int32) * 3 + 1) % N

    params = init_params(k_p, ndim_in, ndim_out, edim)

    scores = model_forward(params, src, dst, nfeats, efeats)
    jax.block_until_ready(scores)

    assert scores.shape == (E, N_CLASSES) and scores.dtype == jnp.float32
    assert bool(jnp.all(jnp.isfinite(scores)))

    ref = _reference_forward(params, src, dst, nfeats, efeats)
    rel_err = float(jnp.max(jnp.abs(scores - ref)) / (jnp.max(jnp.abs(ref)) + 1e-6))
    assert rel_err < 0.1, f"numerical mismatch vs f32 reference: {rel_err}"

    print("KERNEL_OK")
</pallas_src>

<mosaic_0001>
module attributes {stable_mosaic.version = 11 : i64} {
  func.func @_sage_layer_kernel(%arg0: i32, %arg1: i32, %arg2: memref<1xi32, #tpu.memory_space<smem>>, %arg3: memref<1xi32, #tpu.memory_space<smem>>, %arg4: memref<128x256xbf16, #tpu.memory_space<vmem>>, %arg5: memref<1x128xi32, #tpu.memory_space<vmem>>, %arg6: memref<16x128xbf16, #tpu.memory_space<vmem>>, %arg7: memref<16x1xf32, #tpu.memory_space<vmem>>, %arg8: memref<256x128xbf16, #tpu.memory_space<vmem>>, %arg9: memref<256x128xbf16, #tpu.memory_space<vmem>>, %arg10: memref<1x128xf32, #tpu.memory_space<vmem>>, %arg11: memref<1x128xf32, #tpu.memory_space<vmem>>, %arg12: memref<16x128xbf16, #tpu.memory_space<vmem>>, %arg13: memref<16x256xf32, #tpu.memory_space<vmem>>) attributes {dimension_semantics = [#tpu.dimension_semantics<parallel>, #tpu.dimension_semantics<arbitrary>], iteration_bounds = array<i64: 1, 1>, scalar_prefetch = 2 : i64, scratch_operands = 1 : i64, tpu.core_type = #tpu.core_type<tc>, window_params = [{transform_indices = @transform_0, window_bounds = array<i64: 128, 256>}, {transform_indices = @transform_1, window_bounds = array<i64: 1, 128>}, {transform_indices = @transform_2, window_bounds = array<i64: 16, 128>}, {transform_indices = @transform_3, window_bounds = array<i64: 16, 1>}, {pipeline_mode = #tpu.pipeline_mode<synchronous>, transform_indices = @transform_4, window_bounds = array<i64: 256, 128>}, {pipeline_mode = #tpu.pipeline_mode<synchronous>, transform_indices = @transform_5, window_bounds = array<i64: 256, 128>}, {pipeline_mode = #tpu.pipeline_mode<synchronous>, transform_indices = @transform_6, window_bounds = array<i64: 1, 128>}, {pipeline_mode = #tpu.pipeline_mode<synchronous>, transform_indices = @transform_7, window_bounds = array<i64: 1, 128>}, {transform_indices = @transform_8, window_bounds = array<i64: 16, 128>}]} {
    %c0_i32 = arith.constant 0 : i32
    %0 = arith.cmpi eq, %arg1, %c0_i32 : i32
    %1 = arith.extui %0 : i1 to i32
    %c0_i32_0 = arith.constant 0 : i32
    %2 = arith.cmpi ne, %1, %c0_i32_0 : i32
    scf.if %2 {
      %c0 = arith.constant 0 : index
      %c0_4 = arith.constant 0 : index
      %11 = vector.load %arg6[%c0, %c0_4] : memref<16x128xbf16, #tpu.memory_space<vmem>>, vector<16x128xbf16>
      %12 = arith.extf %11 : vector<16x128xbf16> to vector<16x128xf32>
      %c0_5 = arith.constant 0 : index
      %c0_6 = arith.constant 0 : index
      %13 = vector.load %arg13[%c0_5, %c0_6] : memref<16x256xf32, #tpu.memory_space<vmem>>, vector<16x128xf32>
      tpu.vector_store %arg13[%c0_5, %c0_6], %12 {strides = array<i32>} : memref<16x256xf32, #tpu.memory_space<vmem>>, vector<16x128xf32>,
      %cst = arith.constant 0.000000e+00 : f32
      %14 = vector.broadcast %cst : f32 to vector<16x128xf32>
      %c0_7 = arith.constant 0 : index
      %c128 = arith.constant 128 : index
      %15 = vector.load %arg13[%c0_7, %c128] : memref<16x256xf32, #tpu.memory_space<vmem>>, vector<16x128xf32>
      tpu.vector_store %arg13[%c0_7, %c128], %14 {strides = array<i32>} : memref<16x256xf32, #tpu.memory_space<vmem>>, vector<16x128xf32>,
    } else {
    }
    %3 = arith.index_cast %arg0 : i32 to index
    %4 = memref.load %arg3[%3] : memref<1xi32, #tpu.memory_space<smem>>
    %5 = arith.cmpi slt, %arg1, %4 : i32
    %6 = arith.extui %5 : i1 to i32
    %c0_i32_1 = arith.constant 0 : i32
    %7 = arith.cmpi ne, %6, %c0_i32_1 : i32
    scf.if %7 {
      %c0 = arith.constant 0 : index
      %c0_4 = arith.constant 0 : index
      %11 = vector.load %arg4[%c0, %c0_4] : memref<128x256xbf16, #tpu.memory_space<vmem>>, vector<128x256xbf16>
      %c0_5 = arith.constant 0 : index
      %c0_6 = arith.constant 0 : index
      %12 = vector.load %arg8[%c0_5, %c0_6] : memref<256x128xbf16, #tpu.memory_space<vmem>>, vector<256x128xbf16>
      %cst = arith.constant dense<0.000000e+00> : vector<128x128xf32>
      %13 = tpu.matmul %11, %12, %cst {dimension_numbers = #tpu.dot_dimension_numbers<[1], [0], [0], [1], [0, 0, 1, 1], [], []>} : vector<128x256xbf16>, vector<256x128xbf16>, vector<128x128xf32> -> vector<128x128xf32>
      %14 = tpu.iota {dimensions = array<i32: 0>} : vector<16x128xi32>
      %c16_i32 = arith.constant 16 : i32
      %15 = arith.muli %arg0, %c16_i32 : i32
      %16 = vector.broadcast %15 : i32 to vector<16x128xi32>
      %17 = arith.addi %14, %16 : vector<16x128xi32>
      %c0_7 = arith.constant 0 : index
      %c0_8 = arith.constant 0 : index
      %18 = vector.load %arg5[%c0_7, %c0_8] : memref<1x128xi32, #tpu.memory_space<vmem>>, vector<1x128xi32>
      %19 = vector.broadcast %18 : vector<1x128xi32> to vector<16x128xi32>
      %20 = arith.cmpi eq, %17, %19 : vector<16x128xi32>
      %21 = arith.extui %20 : vector<16x128xi1> to vector<16x128xi32>
      %22 = arith.sitofp %21 : vector<16x128xi32> to vector<16x128xf32>
      %23 = arith.truncf %22 : vector<16x128xf32> to vector<16x128xbf16>
      %c0_9 = arith.constant 0 : index
      %c128 = arith.constant 128 : index
      %24 = vector.load %arg13[%c0_9, %c128] : memref<16x256xf32, #tpu.memory_space<vmem>>, vector<16x128xf32>
      %25 = arith.truncf %13 : vector<128x128xf32> to vector<128x128xbf16>
      %cst_10 = arith.constant dense<0.000000e+00> : vector<16x128xf32>
      %26 = tpu.matmul %23, %25, %cst_10 {dimension_numbers = #tpu.dot_dimension_numbers<[1], [0], [0], [1], [0, 0, 1, 1], [], []>} : vector<16x128xbf16>, vector<128x128xbf16>, vector<16x128xf32> -> vector<16x128xf32>
      %27 = arith.addf %24, %26 : vector<16x128xf32>
      %c0_11 = arith.constant 0 : index
      %c128_12 = arith.constant 128 : index
      %28 = vector.load %arg13[%c0_11, %c128_12] : memref<16x256xf32, #tpu.memory_space<vmem>>, vector<16x128xf32>
      tpu.vector_store %arg13[%c0_11, %c128_12], %27 {strides = array<i32>} : memref<16x256xf32, #tpu.memory_space<vmem>>, vector<16x128xf32>,
    } else {
    }
    %c0_i32_2 = arith.constant 0 : i32
    %8 = arith.cmpi eq, %arg1, %c0_i32_2 : i32
    %9 = arith.extui %8 : i1 to i32
    %c0_i32_3 = arith.constant 0 : i32
    %10 = arith.cmpi ne, %9, %c0_i32_3 : i32
    scf.if %10 {
      %c0 = arith.constant 0 : index
      %c0_4 = arith.constant 0 : index
      %11 = vector.load %arg7[%c0, %c0_4] : memref<16x1xf32, #tpu.memory_space<vmem>>, vector<16x1xf32>
      %cst = arith.constant 0.000000e+00 : f32
      %12 = vector.broadcast %cst : f32 to vector<16x1xf32>
      %13 = arith.cmpf ogt, %11, %12 : vector<16x1xf32>
      %14 = arith.extui %13 : vector<16x1xi1> to vector<16x1xi32>
      %15 = arith.sitofp %14 : vector<16x1xi32> to vector<16x1xf32>
      %c0_5 = arith.constant 0 : index
      %c128 = arith.constant 128 : index
      %16 = vector.load %arg13[%c0_5, %c128] : memref<16x256xf32, #tpu.memory_space<vmem>>, vector<16x128xf32>
      %17 = vector.broadcast %11 : vector<16x1xf32> to vector<16x128xf32>
      %18 = arith.mulf %16, %17 : vector<16x128xf32>
      %c0_6 = arith.constant 0 : index
      %c0_7 = arith.constant 0 : index
      %19 = vector.load %arg10[%c0_6, %c0_7] : memref<1x128xf32, #tpu.memory_space<vmem>>, vector<1x128xf32>
      %20 = vector.broadcast %15 : vector<16x1xf32> to vector<16x128xf32>
      %21 = vector.broadcast %19 : vector<1x128xf32> to vector<16x128xf32>
      %22 = arith.mulf %20, %21 : vector<16x128xf32>
      %23 = arith.addf %18, %22 : vector<16x128xf32>
      %c0_8 = arith.constant 0 : index
      %c128_9 = arith.constant 128 : index
      %24 = vector.load %arg13[%c0_8, %c128_9] : memref<16x256xf32, #tpu.memory_space<vmem>>, vector<16x128xf32>
      tpu.vector_store %arg13[%c0_8, %c128_9], %23 {strides = array<i32>} : memref<16x256xf32, #tpu.memory_space<vmem>>, vector<16x128xf32>,
      %c0_10 = arith.constant 0 : index
      %c0_11 = arith.constant 0 : index
      %25 = vector.load %arg13[%c0_10, %c0_11] : memref<16x256xf32, #tpu.memory_space<vmem>>, vector<16x256xf32>
      %26 = arith.truncf %25 : vector<16x256xf32> to vector<16x256xbf16>
      %c0_12 = arith.constant 0 : index
      %c0_13 = arith.constant 0 : index
      %27 = vector.load %arg9[%c0_12, %c0_13] : memref<256x128xbf16, #tpu.memory_space<vmem>>, vector<256x128xbf16>
      %cst_14 = arith.constant dense<0.000000e+00> : vector<16x128xf32>
      %28 = tpu.matmul %26, %27, %cst_14 {dimension_numbers = #tpu.dot_dimension_numbers<[1], [0], [0], [1], [0, 0, 1, 1], [], []>} : vector<16x256xbf16>, vector<256x128xbf16>, vector<16x128xf32> -> vector<16x128xf32>
      %c0_15 = arith.constant 0 : index
      %c0_16 = arith.constant 0 : index
      %29 = vector.load %arg11[%c0_15, %c0_16] : memref<1x128xf32, #tpu.memory_space<vmem>>, vector<1x128xf32>
      %30 = vector.broadcast %29 : vector<1x128xf32> to vector<16x128xf32>
      %31 = arith.addf %28, %30 : vector<16x128xf32>
      %cst_17 = arith.constant 0.000000e+00 : f32
      %32 = vector.broadcast %cst_17 : f32 to vector<16x128xf32>
      %33 = arith.maximumf %31, %32 : vector<16x128xf32>
      %34 = arith.truncf %33 : vector<16x128xf32> to vector<16x128xbf16>
      %c0_18 = arith.constant 0 : index
      %c0_19 = arith.constant 0 : index
      %35 = vector.load %arg12[%c0_18, %c0_19] : memref<16x128xbf16, #tpu.memory_space<vmem>>, vector<16x128xbf16>
      tpu.vector_store %arg12[%c0_18, %c0_19], %34 {strides = array<i32>} : memref<16x128xbf16, #tpu.memory_space<vmem>>, vector<16x128xbf16>,
    } else {
    }
    return
  }
  func.func @transform_0(%arg0: i32, %arg1: i32, %arg2: memref<1xi32, #tpu.memory_space<smem>>, %arg3: memref<1xi32, #tpu.memory_space<smem>>) -> (i32, i32) {
    %c1_i32 = arith.constant 1 : i32
    %0 = arith.muli %arg0, %c1_i32 : i32
    %1 = arith.addi %0, %arg1 : i32
    %2 = arith.index_cast %1 : i32 to index
    %3 = memref.load %arg2[%2] : memref<1xi32, #tpu.memory_space<smem>>
    %c0_i32 = arith.constant 0 : i32
    %c0_i32_0 = arith.constant 0 : i32
    return %3, %c0_i32 : i32, i32
  }
  func.func @transform_1(%arg0: i32, %arg1: i32, %arg2: memref<1xi32, #tpu.memory_space<smem>>, %arg3: memref<1xi32, #tpu.memory_space<smem>>) -> (i32, i32) {
    %c1_i32 = arith.constant 1 : i32
    %0 = arith.muli %arg0, %c1_i32 : i32
    %1 = arith.addi %0, %arg1 : i32
    %2 = arith.index_cast %1 : i32 to index
    %3 = memref.load %arg2[%2] : memref<1xi32, #tpu.memory_space<smem>>
    %c0_i32 = arith.constant 0 : i32
    %c0_i32_0 = arith.constant 0 : i32
    return %c0_i32, %3 : i32, i32
  }
  func.func @transform_2(%arg0: i32, %arg1: i32, %arg2: memref<1xi32, #tpu.memory_space<smem>>, %arg3: memref<1xi32, #tpu.memory_space<smem>>) -> (i32, i32) {
    %c0_i32 = arith.constant 0 : i32
    %c0_i32_0 = arith.constant 0 : i32
    return %arg0, %c0_i32 : i32, i32
  }
  func.func @transform_3(%arg0: i32, %arg1: i32, %arg2: memref<1xi32, #tpu.memory_space<smem>>, %arg3: memref<1xi32, #tpu.memory_space<smem>>) -> (i32, i32) {
    %c0_i32 = arith.constant 0 : i32
    %c0_i32_0 = arith.constant 0 : i32
    return %arg0, %c0_i32 : i32, i32
  }
  func.func @transform_4(%arg0: i32, %arg1: i32, %arg2: memref<1xi32, #tpu.memory_space<smem>>, %arg3: memref<1xi32, #tpu.memory_space<smem>>) -> (i32, i32) {
    %c0_i32 = arith.constant 0 : i32
    %c0_i32_0 = arith.constant 0 : i32
    %c0_i32_1 = arith.constant 0 : i32
    return %c0_i32, %c0_i32_0 : i32, i32
  }
  func.func @transform_5(%arg0: i32, %arg1: i32, %arg2: memref<1xi32, #tpu.memory_space<smem>>, %arg3: memref<1xi32, #tpu.memory_space<smem>>) -> (i32, i32) {
    %c0_i32 = arith.constant 0 : i32
    %c0_i32_0 = arith.constant 0 : i32
    %c0_i32_1 = arith.constant 0 : i32
    return %c0_i32, %c0_i32_0 : i32, i32
  }
  func.func @transform_6(%arg0: i32, %arg1: i32, %arg2: memref<1xi32, #tpu.memory_space<smem>>, %arg3: memref<1xi32, #tpu.memory_space<smem>>) -> (i32, i32) {
    %c0_i32 = arith.constant 0 : i32
    %c0_i32_0 = arith.constant 0 : i32
    %c0_i32_1 = arith.constant 0 : i32
    return %c0_i32, %c0_i32_0 : i32, i32
  }
  func.func @transform_7(%arg0: i32, %arg1: i32, %arg2: memref<1xi32, #tpu.memory_space<smem>>, %arg3: memref<1xi32, #tpu.memory_space<smem>>) -> (i32, i32) {
    %c0_i32 = arith.constant 0 : i32
    %c0_i32_0 = arith.constant 0 : i32
    %c0_i32_1 = arith.constant 0 : i32
    return %c0_i32, %c0_i32_0 : i32, i32
  }
  func.func @transform_8(%arg0: i32, %arg1: i32, %arg2: memref<1xi32, #tpu.memory_space<smem>>, %arg3: memref<1xi32, #tpu.memory_space<smem>>) -> (i32, i32) {
    %c0_i32 = arith.constant 0 : i32
    %c0_i32_0 = arith.constant 0 : i32
    return %arg0, %c0_i32 : i32, i32
  }
}

module attributes {stable_mosaic.version = 11 : i64} {
  func.func @_sage_layer_kernel(%arg0: i32, %arg1: i32, %arg2: memref<1xi32, #tpu.memory_space<smem>>, %arg3: memref<1xi32, #tpu.memory_space<smem>>, %arg4: memref<128x128xbf16, #tpu.memory_space<vmem>>, %arg5: memref<1x128xi32, #tpu.memory_space<vmem>>, %arg6: memref<16x128xbf16, #tpu.memory_space<vmem>>, %arg7: memref<16x1xf32, #tpu.memory_space<vmem>>, %arg8: memref<128x128xbf16, #tpu.memory_space<vmem>>, %arg9: memref<256x128xbf16, #tpu.memory_space<vmem>>, %arg10: memref<1x128xf32, #tpu.memory_space<vmem>>, %arg11: memref<1x128xf32, #tpu.memory_space<vmem>>, %arg12: memref<16x128xbf16, #tpu.memory_space<vmem>>, %arg13: memref<16x256xf32, #tpu.memory_space<vmem>>) attributes {dimension_semantics = [#tpu.dimension_semantics<parallel>, #tpu.dimension_semantics<arbitrary>], iteration_bounds = array<i64: 1, 1>, scalar_prefetch = 2 : i64, scratch_operands = 1 : i64, tpu.core_type = #tpu.core_type<tc>, window_params = [{transform_indices = @transform_0, window_bounds = array<i64: 128, 128>}, {transform_indices = @transform_1, window_bounds = array<i64: 1, 128>}, {transform_indices = @transform_2, window_bounds = array<i64: 16, 128>}, {transform_indices = @transform_3, window_bounds = array<i64: 16, 1>}, {pipeline_mode = #tpu.pipeline_mode<synchronous>, transform_indices = @transform_4, window_bounds = array<i64: 128, 128>}, {pipeline_mode = #tpu.pipeline_mode<synchronous>, transform_indices = @transform_5, window_bounds = array<i64: 256, 128>}, {pipeline_mode = #tpu.pipeline_mode<synchronous>, transform_indices = @transform_6, window_bounds = array<i64: 1, 128>}, {pipeline_mode = #tpu.pipeline_mode<synchronous>, transform_indices = @transform_7, window_bounds = array<i64: 1, 128>}, {transform_indices = @transform_8, window_bounds = array<i64: 16, 128>}]} {
    %c0_i32 = arith.constant 0 : i32
    %0 = arith.cmpi eq, %arg1, %c0_i32 : i32
    %1 = arith.extui %0 : i1 to i32
    %c0_i32_0 = arith.constant 0 : i32
    %2 = arith.cmpi ne, %1, %c0_i32_0 : i32
    scf.if %2 {
      %c0 = arith.constant 0 : index
      %c0_4 = arith.constant 0 : index
      %11 = vector.load %arg6[%c0, %c0_4] : memref<16x128xbf16, #tpu.memory_space<vmem>>, vector<16x128xbf16>
      %12 = arith.extf %11 : vector<16x128xbf16> to vector<16x128xf32>
      %c0_5 = arith.constant 0 : index
      %c0_6 = arith.constant 0 : index
      %13 = vector.load %arg13[%c0_5, %c0_6] : memref<16x256xf32, #tpu.memory_space<vmem>>, vector<16x128xf32>
      tpu.vector_store %arg13[%c0_5, %c0_6], %12 {strides = array<i32>} : memref<16x256xf32, #tpu.memory_space<vmem>>, vector<16x128xf32>,
      %cst = arith.constant 0.000000e+00 : f32
      %14 = vector.broadcast %cst : f32 to vector<16x128xf32>
      %c0_7 = arith.constant 0 : index
      %c128 = arith.constant 128 : index
      %15 = vector.load %arg13[%c0_7, %c128] : memref<16x256xf32, #tpu.memory_space<vmem>>, vector<16x128xf32>
      tpu.vector_store %arg13[%c0_7, %c128], %14 {strides = array<i32>} : memref<16x256xf32, #tpu.memory_space<vmem>>, vector<16x128xf32>,
    } else {
    }
    %3 = arith.index_cast %arg0 : i32 to index
    %4 = memref.load %arg3[%3] : memref<1xi32, #tpu.memory_space<smem>>
    %5 = arith.cmpi slt, %arg1, %4 : i32
    %6 = arith.extui %5 : i1 to i32
    %c0_i32_1 = arith.constant 0 : i32
    %7 = arith.cmpi ne, %6, %c0_i32_1 : i32
    scf.if %7 {
      %c0 = arith.constant 0 : index
      %c0_4 = arith.constant 0 : index
      %11 = vector.load %arg4[%c0, %c0_4] : memref<128x128xbf16, #tpu.memory_space<vmem>>, vector<128x128xbf16>
      %c0_5 = arith.constant 0 : index
      %c0_6 = arith.constant 0 : index
      %12 = vector.load %arg8[%c0_5, %c0_6] : memref<128x128xbf16, #tpu.memory_space<vmem>>, vector<128x128xbf16>
      %cst = arith.constant dense<0.000000e+00> : vector<128x128xf32>
      %13 = tpu.matmul %11, %12, %cst {dimension_numbers = #tpu.dot_dimension_numbers<[1], [0], [0], [1], [0, 0, 1, 1], [], []>} : vector<128x128xbf16>, vector<128x128xbf16>, vector<128x128xf32> -> vector<128x128xf32>
      %14 = tpu.iota {dimensions = array<i32: 0>} : vector<16x128xi32>
      %c16_i32 = arith.constant 16 : i32
      %15 = arith.muli %arg0, %c16_i32 : i32
      %16 = vector.broadcast %15 : i32 to vector<16x128xi32>
      %17 = arith.addi %14, %16 : vector<16x128xi32>
      %c0_7 = arith.constant 0 : index
      %c0_8 = arith.constant 0 : index
      %18 = vector.load %arg5[%c0_7, %c0_8] : memref<1x128xi32, #tpu.memory_space<vmem>>, vector<1x128xi32>
      %19 = vector.broadcast %18 : vector<1x128xi32> to vector<16x128xi32>
      %20 = arith.cmpi eq, %17, %19 : vector<16x128xi32>
      %21 = arith.extui %20 : vector<16x128xi1> to vector<16x128xi32>
      %22 = arith.sitofp %21 : vector<16x128xi32> to vector<16x128xf32>
      %23 = arith.truncf %22 : vector<16x128xf32> to vector<16x128xbf16>
      %c0_9 = arith.constant 0 : index
      %c128 = arith.constant 128 : index
      %24 = vector.load %arg13[%c0_9, %c128] : memref<16x256xf32, #tpu.memory_space<vmem>>, vector<16x128xf32>
      %25 = arith.truncf %13 : vector<128x128xf32> to vector<128x128xbf16>
      %cst_10 = arith.constant dense<0.000000e+00> : vector<16x128xf32>
      %26 = tpu.matmul %23, %25, %cst_10 {dimension_numbers = #tpu.dot_dimension_numbers<[1], [0], [0], [1], [0, 0, 1, 1], [], []>} : vector<16x128xbf16>, vector<128x128xbf16>, vector<16x128xf32> -> vector<16x128xf32>
      %27 = arith.addf %24, %26 : vector<16x128xf32>
      %c0_11 = arith.constant 0 : index
      %c128_12 = arith.constant 128 : index
      %28 = vector.load %arg13[%c0_11, %c128_12] : memref<16x256xf32, #tpu.memory_space<vmem>>, vector<16x128xf32>
      tpu.vector_store %arg13[%c0_11, %c128_12], %27 {strides = array<i32>} : memref<16x256xf32, #tpu.memory_space<vmem>>, vector<16x128xf32>,
    } else {
    }
    %c0_i32_2 = arith.constant 0 : i32
    %8 = arith.cmpi eq, %arg1, %c0_i32_2 : i32
    %9 = arith.extui %8 : i1 to i32
    %c0_i32_3 = arith.constant 0 : i32
    %10 = arith.cmpi ne, %9, %c0_i32_3 : i32
    scf.if %10 {
      %c0 = arith.constant 0 : index
      %c0_4 = arith.constant 0 : index
      %11 = vector.load %arg7[%c0, %c0_4] : memref<16x1xf32, #tpu.memory_space<vmem>>, vector<16x1xf32>
      %cst = arith.constant 0.000000e+00 : f32
      %12 = vector.broadcast %cst : f32 to vector<16x1xf32>
      %13 = arith.cmpf ogt, %11, %12 : vector<16x1xf32>
      %14 = arith.extui %13 : vector<16x1xi1> to vector<16x1xi32>
      %15 = arith.sitofp %14 : vector<16x1xi32> to vector<16x1xf32>
      %c0_5 = arith.constant 0 : index
      %c128 = arith.constant 128 : index
      %16 = vector.load %arg13[%c0_5, %c128] : memref<16x256xf32, #tpu.memory_space<vmem>>, vector<16x128xf32>
      %17 = vector.broadcast %11 : vector<16x1xf32> to vector<16x128xf32>
      %18 = arith.mulf %16, %17 : vector<16x128xf32>
      %c0_6 = arith.constant 0 : index
      %c0_7 = arith.constant 0 : index
      %19 = vector.load %arg10[%c0_6, %c0_7] : memref<1x128xf32, #tpu.memory_space<vmem>>, vector<1x128xf32>
      %20 = vector.broadcast %15 : vector<16x1xf32> to vector<16x128xf32>
      %21 = vector.broadcast %19 : vector<1x128xf32> to vector<16x128xf32>
      %22 = arith.mulf %20, %21 : vector<16x128xf32>
      %23 = arith.addf %18, %22 : vector<16x128xf32>
      %c0_8 = arith.constant 0 : index
      %c128_9 = arith.constant 128 : index
      %24 = vector.load %arg13[%c0_8, %c128_9] : memref<16x256xf32, #tpu.memory_space<vmem>>, vector<16x128xf32>
      tpu.vector_store %arg13[%c0_8, %c128_9], %23 {strides = array<i32>} : memref<16x256xf32, #tpu.memory_space<vmem>>, vector<16x128xf32>,
      %c0_10 = arith.constant 0 : index
      %c0_11 = arith.constant 0 : index
      %25 = vector.load %arg13[%c0_10, %c0_11] : memref<16x256xf32, #tpu.memory_space<vmem>>, vector<16x256xf32>
      %26 = arith.truncf %25 : vector<16x256xf32> to vector<16x256xbf16>
      %c0_12 = arith.constant 0 : index
      %c0_13 = arith.constant 0 : index
      %27 = vector.load %arg9[%c0_12, %c0_13] : memref<256x128xbf16, #tpu.memory_space<vmem>>, vector<256x128xbf16>
      %cst_14 = arith.constant dense<0.000000e+00> : vector<16x128xf32>
      %28 = tpu.matmul %26, %27, %cst_14 {dimension_numbers = #tpu.dot_dimension_numbers<[1], [0], [0], [1], [0, 0, 1, 1], [], []>} : vector<16x256xbf16>, vector<256x128xbf16>, vector<16x128xf32> -> vector<16x128xf32>
      %c0_15 = arith.constant 0 : index
      %c0_16 = arith.constant 0 : index
      %29 = vector.load %arg11[%c0_15, %c0_16] : memref<1x128xf32, #tpu.memory_space<vmem>>, vector<1x128xf32>
      %30 = vector.broadcast %29 : vector<1x128xf32> to vector<16x128xf32>
      %31 = arith.addf %28, %30 : vector<16x128xf32>
      %cst_17 = arith.constant 0.000000e+00 : f32
      %32 = vector.broadcast %cst_17 : f32 to vector<16x128xf32>
      %33 = arith.maximumf %31, %32 : vector<16x128xf32>
      %34 = arith.truncf %33 : vector<16x128xf32> to vector<16x128xbf16>
      %c0_18 = arith.constant 0 : index
      %c0_19 = arith.constant 0 : index
      %35 = vector.load %arg12[%c0_18, %c0_19] : memref<16x128xbf16, #tpu.memory_space<vmem>>, vector<16x128xbf16>
      tpu.vector_store %arg12[%c0_18, %c0_19], %34 {strides = array<i32>} : memref<16x128xbf16, #tpu.memory_space<vmem>>, vector<16x128xbf16>,
    } else {
    }
    return
  }
  func.func @transform_0(%arg0: i32, %arg1: i32, %arg2: memref<1xi32, #tpu.memory_space<smem>>, %arg3: memref<1xi32, #tpu.memory_space<smem>>) -> (i32, i32) {
    %c1_i32 = arith.constant 1 : i32
    %0 = arith.muli %arg0, %c1_i32 : i32
    %1 = arith.addi %0, %arg1 : i32
    %2 = arith.index_cast %1 : i32 to index
    %3 = memref.load %arg2[%2] : memref<1xi32, #tpu.memory_space<smem>>
    %c0_i32 = arith.constant 0 : i32
    %c0_i32_0 = arith.constant 0 : i32
    return %3, %c0_i32 : i32, i32
  }
  func.func @transform_1(%arg0: i32, %arg1: i32, %arg2: memref<1xi32, #tpu.memory_space<smem>>, %arg3: memref<1xi32, #tpu.memory_space<smem>>) -> (i32, i32) {
    %c1_i32 = arith.constant 1 : i32
    %0 = arith.muli %arg0, %c1_i32 : i32
    %1 = arith.addi %0, %arg1 : i32
    %2 = arith.index_cast %1 : i32 to index
    %3 = memref.load %arg2[%2] : memref<1xi32, #tpu.memory_space<smem>>
    %c0_i32 = arith.constant 0 : i32
    %c0_i32_0 = arith.constant 0 : i32
    return %c0_i32, %3 : i32, i32
  }
  func.func @transform_2(%arg0: i32, %arg1: i32, %arg2: memref<1xi32, #tpu.memory_space<smem>>, %arg3: memref<1xi32, #tpu.memory_space<smem>>) -> (i32, i32) {
    %c0_i32 = arith.constant 0 : i32
    %c0_i32_0 = arith.constant 0 : i32
    return %arg0, %c0_i32 : i32, i32
  }
  func.func @transform_3(%arg0: i32, %arg1: i32, %arg2: memref<1xi32, #tpu.memory_space<smem>>, %arg3: memref<1xi32, #tpu.memory_space<smem>>) -> (i32, i32) {
    %c0_i32 = arith.constant 0 : i32
    %c0_i32_0 = arith.constant 0 : i32
    return %arg0, %c0_i32 : i32, i32
  }
  func.func @transform_4(%arg0: i32, %arg1: i32, %arg2: memref<1xi32, #tpu.memory_space<smem>>, %arg3: memref<1xi32, #tpu.memory_space<smem>>) -> (i32, i32) {
    %c0_i32 = arith.constant 0 : i32
    %c0_i32_0 = arith.constant 0 : i32
    %c0_i32_1 = arith.constant 0 : i32
    return %c0_i32, %c0_i32_0 : i32, i32
  }
  func.func @transform_5(%arg0: i32, %arg1: i32, %arg2: memref<1xi32, #tpu.memory_space<smem>>, %arg3: memref<1xi32, #tpu.memory_space<smem>>) -> (i32, i32) {
    %c0_i32 = arith.constant 0 : i32
    %c0_i32_0 = arith.constant 0 : i32
    %c0_i32_1 = arith.constant 0 : i32
    return %c0_i32, %c0_i32_0 : i32, i32
  }
  func.func @transform_6(%arg0: i32, %arg1: i32, %arg2: memref<1xi32, #tpu.memory_space<smem>>, %arg3: memref<1xi32, #tpu.memory_space<smem>>) -> (i32, i32) {
    %c0_i32 = arith.constant 0 : i32
    %c0_i32_0 = arith.constant 0 : i32
    %c0_i32_1 = arith.constant 0 : i32
    return %c0_i32, %c0_i32_0 : i32, i32
  }
  func.func @transform_7(%arg0: i32, %arg1: i32, %arg2: memref<1xi32, #tpu.memory_space<smem>>, %arg3: memref<1xi32, #tpu.memory_space<smem>>) -> (i32, i32) {
    %c0_i32 = arith.constant 0 : i32
    %c0_i32_0 = arith.constant 0 : i32
    %c0_i32_1 = arith.constant 0 : i32
    return %c0_i32, %c0_i32_0 : i32, i32
  }
  func.func @transform_8(%arg0: i32, %arg1: i32, %arg2: memref<1xi32, #tpu.memory_space<smem>>, %arg3: memref<1xi32, #tpu.memory_space<smem>>) -> (i32, i32) {
    %c0_i32 = arith.constant 0 : i32
    %c0_i32_0 = arith.constant 0 : i32
    return %arg0, %c0_i32 : i32, i32
  }
}

module attributes {stable_mosaic.version = 11 : i64} {
  func.func @_predictor_kernel(%arg0: i32, %arg1: memref<128x256xbf16, #tpu.memory_space<vmem>>, %arg2: memref<256x128xbf16, #tpu.memory_space<vmem>>, %arg3: memref<1x128xf32, #tpu.memory_space<vmem>>, %arg4: memref<128x128xbf16, #tpu.memory_space<vmem>>) attributes {dimension_semantics = [#tpu.dimension_semantics<parallel>], iteration_bounds = array<i64: 1>, scalar_prefetch = 0 : i64, scratch_operands = 0 : i64, tpu.core_type = #tpu.core_type<tc>, window_params = [{transform_indices = @transform_0, window_bounds = array<i64: 128, 256>}, {pipeline_mode = #tpu.pipeline_mode<synchronous>, transform_indices = @transform_1, window_bounds = array<i64: 256, 128>}, {pipeline_mode = #tpu.pipeline_mode<synchronous>, transform_indices = @transform_2, window_bounds = array<i64: 1, 128>}, {transform_indices = @transform_3, window_bounds = array<i64: 128, 128>}]} {
    %c0 = arith.constant 0 : index
    %c0_0 = arith.constant 0 : index
    %0 = vector.load %arg1[%c0, %c0_0] : memref<128x256xbf16, #tpu.memory_space<vmem>>, vector<128x256xbf16>
    %c0_1 = arith.constant 0 : index
    %c0_2 = arith.constant 0 : index
    %1 = vector.load %arg2[%c0_1, %c0_2] : memref<256x128xbf16, #tpu.memory_space<vmem>>, vector<256x128xbf16>
    %cst = arith.constant dense<0.000000e+00> : vector<128x128xf32>
    %2 = tpu.matmul %0, %1, %cst {dimension_numbers = #tpu.dot_dimension_numbers<[1], [0], [0], [1], [0, 0, 1, 1], [], []>} : vector<128x256xbf16>, vector<256x128xbf16>, vector<128x128xf32> -> vector<128x128xf32>
    %c0_3 = arith.constant 0 : index
    %c0_4 = arith.constant 0 : index
    %3 = vector.load %arg3[%c0_3, %c0_4] : memref<1x128xf32, #tpu.memory_space<vmem>>, vector<1x128xf32>
    %4 = vector.broadcast %3 : vector<1x128xf32> to vector<128x128xf32>
    %5 = arith.addf %2, %4 : vector<128x128xf32>
    %6 = arith.truncf %5 : vector<128x128xf32> to vector<128x128xbf16>
    %c0_5 = arith.constant 0 : index
    %c0_6 = arith.constant 0 : index
    %7 = vector.load %arg4[%c0_5, %c0_6] : memref<128x128xbf16, #tpu.memory_space<vmem>>, vector<128x128xbf16>
    tpu.vector_store %arg4[%c0_5, %c0_6], %6 {strides = array<i32>} : memref<128x128xbf16, #tpu.memory_space<vmem>>, vector<128x128xbf16>,
    return
  }
  func.func @transform_0(%arg0: i32) -> (i32, i32) {
    %c0_i32 = arith.constant 0 : i32
    %c0_i32_0 = arith.constant 0 : i32
    return %arg0, %c0_i32 : i32, i32
  }
  func.func @transform_1(%arg0: i32) -> (i32, i32) {
    %c0_i32 = arith.constant 0 : i32
    %c0_i32_0 = arith.constant 0 : i32
    %c0_i32_1 = arith.constant 0 : i32
    return %c0_i32, %c0_i32_0 : i32, i32
  }
  func.func @transform_2(%arg0: i32) -> (i32, i32) {
    %c0_i32 = arith.constant 0 : i32
    %c0_i32_0 = arith.constant 0 : i32
    %c0_i32_1 = arith.constant 0 : i32
    return %c0_i32, %c0_i32_0 : i32, i32
  }
  func.func @transform_3(%arg0: i32) -> (i32, i32) {
    %c0_i32 = arith.constant 0 : i32
    %c0_i32_0 = arith.constant 0 : i32
    return %arg0, %c0_i32 : i32, i32
  }
}

</mosaic_0001>

<llo_original>
// kernel: _forward_core.4
$region0: #{_forward_core.4}
  #allocation0 [shape = 'u32[]', space=smem, size = 0x4, offset = 0x4, fixed_abs, tag = 'smem constant byte address 0x4 - core index']
  #allocation1 [shape = 'u32[144,128]{1,0:T(1,128)}', space=vmem, size = 0x12000, scoped, tag = 'internal scratch']
  #allocation2 [shape = 'f32[16,256]{1,0:T(8,128)}', space=vmem, size = 0x4000, scoped, tag = 'scratch operand']
  #allocation3 [shape = 's32[1]{0}', space=sflag, size = 0x4, scoped, tag = 'scoped memory for _forward_core.4']
  #allocation4 [shape = 's32[1]{0:T(128)S(6)}', space=smem, size = 0x200, scoped, tag = 'prefetched SMEM operand 0']
  #allocation5 [shape = 's32[1]{0:T(128)S(6)}', space=smem, size = 0x200, scoped, tag = 'prefetched SMEM operand 1']
  %s0 = inlined_call_operand.<no memory space> [shape: s32[1], index: 0, kind: input, shape index: {}]
  %s1 = inlined_call_operand.<no memory space> [shape: s32[1], index: 1, kind: input, shape index: {}]
  %s2 = inlined_call_operand.vmem [shape: bf16[128,256], index: 2, kind: input, shape index: {}]
  %s3 = inlined_call_operand.vmem [shape: s32[1,128], index: 3, kind: input, shape index: {}]
  %s4 = inlined_call_operand.vmem [shape: bf16[16,128], index: 4, kind: input, shape index: {}]
  %s5 = inlined_call_operand.vmem [shape: f32[16,1], index: 5, kind: input, shape index: {}]
  %s6 = inlined_call_operand.vmem [shape: bf16[256,128], index: 6, kind: input, shape index: {}]
  %s7 = inlined_call_operand.vmem [shape: bf16[256,128], index: 7, kind: input, shape index: {}]
  %s8 = inlined_call_operand.vmem [shape: f32[1,128], index: 8, kind: input, shape index: {}]
  %s9 = inlined_call_operand.vmem [shape: f32[1,128], index: 9, kind: input, shape index: {}]
  %s10 = inlined_call_operand.vmem [shape: bf16[16,128], index: 10, kind: output, shape index: {}]
  %s11 = sld [smem:[#allocation0]]
  $region54: #{_forward_core.4} parent=0
    _
  %s13 = ssub.s32 1, %s11
  %s14 = scalar_select 0, %s13, %s11
  %15 = sst [smem:[#allocation4]] %s0
  %16 = sst [smem:[#allocation5]] %s1
  // Predicated region
  $region2: #{_forward_core.4} parent=0 // pred_check
    _
  $region3: #{_forward_core.4} parent=0 // pred_check_branch
    %18 = sbr.rel (0) target = $region5
  $region4: #{_forward_core.4} parent=0 // pred_region
    %s19 = sadd.s32 0, 0
    %s20 = sld [smem:[#allocation4 + %s19]]
    %s21 = smul.u32 16, %s20
    %p22 = scmp.lt.s32.totalorder %s21, 15
    %s23 = scalar_select %p22, %s21, 15
    %s24 = smul.addr %s23, 2
    %s25 = smul.addr %s24, 4
    %s26 = scalar_lea.vmem %s2, %s25
    %s27 = sadd.s32 0, 0
    %s28 = sld [smem:[#allocation4 + %s27]]
    %s29 = smul.u32 16, %s28
  $region5: #{_forward_core.4} parent=0 // pred_fallthru
    _
  // Predicated region
  $region6: #{_forward_core.4} parent=0 // pred_check
    _
  $region7: #{_forward_core.4} parent=0 // pred_check_branch
    %31 = sbr.rel (0) target = $region9
  $region8: #{_forward_core.4} parent=0 // pred_region
    %s32 = sadd.s32 0, 0
    %s33 = sld [smem:[#allocation4 + %s32]]
    %p34 = scmp.lt.s32.totalorder %s33, 0
    %s35 = scalar_select %p34, %s33, 0
    %s36 = scalar_lea.vmem %s3, %s35
    %s37 = sadd.s32 0, 0
    %s38 = sld [smem:[#allocation4 + %s37]]
  $region9: #{_forward_core.4} parent=0 // pred_fallthru
    _
  // Predicated region
  $region10: #{_forward_core.4} parent=0 // pred_check
    _
  $region11: #{_forward_core.4} parent=0 // pred_check_branch
    %40 = sbr.rel (0) target = $region13
  $region12: #{_forward_core.4} parent=0 // pred_region
    _
  $region13: #{_forward_core.4} parent=0 // pred_fallthru
    _
  // Predicated region
  $region14: #{_forward_core.4} parent=0 // pred_check
    _
  $region15: #{_forward_core.4} parent=0 // pred_check_branch
    %42 = sbr.rel (0) target = $region17
  $region16: #{_forward_core.4} parent=0 // pred_region
    _
  $region17: #{_forward_core.4} parent=0 // pred_fallthru
    _
  // Predicated region
  $region18: #{_forward_core.4} parent=0 // pred_check
    _
  $region19: #{_forward_core.4} parent=0 // pred_check_branch
    %44 = sbr.rel (0) target = $region21
  $region20: #{_forward_core.4} parent=0 // pred_region
    _
  $region21: #{_forward_core.4} parent=0 // pred_fallthru
    _
  // Predicated region
  $region22: #{_forward_core.4} parent=0 // pred_check
    _
  $region23: #{_forward_core.4} parent=0 // pred_check_branch
    %46 = sbr.rel (0) target = $region25
  $region24: #{_forward_core.4} parent=0 // pred_region
    _
  $region25: #{_forward_core.4} parent=0 // pred_fallthru
    _
  // Predicated region
  $region26: #{_forward_core.4} parent=0 // pred_check
    _
  $region27: #{_forward_core.4} parent=0 // pred_check_branch
    %48 = sbr.rel (0) target = $region29
  $region28: #{_forward_core.4} parent=0 // pred_region
    _
  $region29: #{_forward_core.4} parent=0 // pred_fallthru
    _
  // Predicated region
  $region30: #{_forward_core.4} parent=0 // pred_check
    _
  $region31: #{_forward_core.4} parent=0 // pred_check_branch
    %50 = sbr.rel (0) target = $region33
  $region32: #{_forward_core.4} parent=0 // pred_region
    _
  $region33: #{_forward_core.4} parent=0 // pred_fallthru
    _
  %s51 = sadd.s32 0, 0
  %s52 = sld [smem:[#allocation4 + %s51]]
  %s53 = smul.u32 16, %s52
  %p54 = scmp.lt.s32.totalorder %s53, 15
  %s55 = scalar_select %p54, %s53, 15
  %s56 = smul.addr %s55, 2
  %s57 = smul.addr %s56, 4
  %s58 = scalar_lea.vmem %s2, %s57
  %s59 = sadd.s32 0, 0
  %s60 = sld [smem:[#allocation4 + %s59]]
  %p61 = scmp.lt.s32.totalorder %s60, 0
  %s62 = scalar_select %p61, %s60, 0
  %s63 = scalar_lea.vmem %s3, %s62
  %s64 = sadd.s32 0, 0
  %s65 = sld [smem:[#allocation4 + %s64]]
  %s66 = smul.u32 16, %s65
  %p67 = scmp.lt.s32.totalorder %s66, 15
  %s68 = scalar_select %p67, %s66, 15
  %s69 = smul.addr %s68, 2
  %s70 = smul.addr %s69, 4
  %s71 = scalar_lea.vmem %s2, %s70
  %s72 = sadd.s32 0, 0
  %s73 = sld [smem:[#allocation4 + %s72]]
  %s74 = smul.u32 16, %s73
  %s75 = sadd.s32 0, 0
  %s76 = sld [smem:[#allocation4 + %s75]]
  %p77 = scmp.lt.s32.totalorder %s76, 0
  %s78 = scalar_select %p77, %s76, 0
  %s79 = scalar_lea.vmem %s3, %s78
  %s80 = sadd.s32 0, 0
  %s81 = sld [smem:[#allocation4 + %s80]]
  %p83 = scmp.eq.s32.totalorder 0, 0
  // Predicated region
  $region34: #{_forward_core.4} parent=0 // pred_check
    %p84 = pneg %p83
  $region35: #{_forward_core.4} parent=0 // pred_check_branch
    %86 = sbr.rel (%p84) target = $region37
  $region36: #{_forward_core.4} parent=0 // pred_region
    %v87 = vld [vmem:[%s4] sm:$0xf]
    %v88 = vld [vmem:[%s4 + $0x4] sm:$0xf]
    %v89 = vunpack.c.l.bf16 %v87
    %v90 = vunpack.c.l.bf16 %v88
    %91 = vst [vmem:[#allocation2] sm:$0xff] %v89
    %92 = vst [vmem:[#allocation2 + $0x10] sm:$0xff] %v90
    %93 = vst [vmem:[#allocation2 + $0x8] sm:$0xff] 0.0
    %94 = vst [vmem:[#allocation2 + $0x18] sm:$0xff] 0.0
  $region37: #{_forward_core.4} parent=0 // pred_fallthru
    _
  %s95 = sld [smem:[#allocation5]]
  %p96 = scmp.lt.s32.totalorder 0, %s95
  // Predicated region
  $region38: #{_forward_core.4} parent=0 // pred_check
    %p97 = pneg %p96
  $region39: #{_forward_core.4} parent=0 // pred_check_branch
    %99 = sbr.rel (%p97) target = $region41
  $region40: #{_forward_core.4} parent=0 // pred_region
    %v100 = vld [vmem:[%s71] sm:$0xff]
    %v101 = vld [vmem:[%s71 + $0x8] sm:$0xff]
    %v102 = vld [vmem:[%s71 + $0x10] sm:$0xff]
    %v103 = vld [vmem:[%s71 + $0x18] sm:$0xff]
    %v104 = vld [vmem:[%s71 + $0x20] sm:$0xff]
    %v105 = vld [vmem:[%s71 + $0x28] sm:$0xff]
    %v106 = vld [vmem:[%s71 + $0x30] sm:$0xff]
    %v107 = vld [vmem:[%s71 + $0x38] sm:$0xff]
    %v108 = vld [vmem:[%s71 + $0x40] sm:$0xff]
    %v109 = vld [vmem:[%s71 + $0x48] sm:$0xff]
    %v110 = vld [vmem:[%s71 + $0x50] sm:$0xff]
    %v111 = vld [vmem:[%s71 + $0x58] sm:$0xff]
    %v112 = vld [vmem:[%s71 + $0x60] sm:$0xff]
    %v113 = vld [vmem:[%s71 + $0x68] sm:$0xff]
    %v114 = vld [vmem:[%s71 + $0x70] sm:$0xff]
    %v115 = vld [vmem:[%s71 + $0x78] sm:$0xff]
    %v116 = vld [vmem:[%s6] sm:$0xf]
    %v117 = vld [vmem:[%s6 + $0x4] sm:$0xf]
    %v118 = vld [vmem:[%s6 + $0x8] sm:$0xf]
    %v119 = vld [vmem:[%s6 + $0xc] sm:$0xf]
    %v120 = vld [vmem:[%s6 + $0x10] sm:$0xf]
    %v121 = vld [vmem:[%s6 + $0x14] sm:$0xf]
    %v122 = vld [vmem:[%s6 + $0x18] sm:$0xf]
    %v123 = vld [vmem:[%s6 + $0x1c] sm:$0xf]
    %v124 = vld [vmem:[%s6 + $0x20] sm:$0xf]
    %v125 = vld [vmem:[%s6 + $0x24] sm:$0xf]
    %v126 = vld [vmem:[%s6 + $0x28] sm:$0xf]
    %v127 = vld [vmem:[%s6 + $0x2c] sm:$0xf]
    %v128 = vld [vmem:[%s6 + $0x30] sm:$0xf]
    %v129 = vld [vmem:[%s6 + $0x34] sm:$0xf]
    %v130 = vld [vmem:[%s6 + $0x38] sm:$0xf]
    %v131 = vld [vmem:[%s6 + $0x3c] sm:$0xf]
    %v132 = vld [vmem:[%s6 + $0x40] sm:$0xf]
    %v133 = vld [vmem:[%s6 + $0x44] sm:$0xf]
    %v134 = vld [vmem:[%s6 + $0x48] sm:$0xf]
    %v135 = vld [vmem:[%s6 + $0x4c] sm:$0xf]
    %v136 = vld [vmem:[%s6 + $0x50] sm:$0xf]
    %v137 = vld [vmem:[%s6 + $0x54] sm:$0xf]
    %v138 = vld [vmem:[%s6 + $0x58] sm:$0xf]
    %v139 = vld [vmem:[%s6 + $0x5c] sm:$0xf]
    %v140 = vld [vmem:[%s6 + $0x60] sm:$0xf]
    %v141 = vld [vmem:[%s6 + $0x64] sm:$0xf]
    %v142 = vld [vmem:[%s6 + $0x68] sm:$0xf]
    %v143 = vld [vmem:[%s6 + $0x6c] sm:$0xf]
    %v144 = vld [vmem:[%s6 + $0x70] sm:$0xf]
    %v145 = vld [vmem:[%s6 + $0x74] sm:$0xf]
    %v146 = vld [vmem:[%s6 + $0x78] sm:$0xf]
    %v147 = vld [vmem:[%s6 + $0x7c] sm:$0xf]
    %v164 = vunpack.c.l.b16 %v100
    %v165 = vunpack.c.h.b16 %v100
    %v166 = vunpack.c.l.b16 %v101
    %v167 = vunpack.c.h.b16 %v101
    %v168 = vunpack.c.l.b16 %v102
    %v169 = vunpack.c.h.b16 %v102
    %v170 = vunpack.c.l.b16 %v103
    %v171 = vunpack.c.h.b16 %v103
    %v172 = vunpack.c.l.b16 %v104
    %v173 = vunpack.c.h.b16 %v104
    %v174 = vunpack.c.l.b16 %v105
    %v175 = vunpack.c.h.b16 %v105
    %v176 = vunpack.c.l.b16 %v106
    %v177 = vunpack.c.h.b16 %v106
    %v178 = vunpack.c.l.b16 %v107
    %v179 = vunpack.c.h.b16 %v107
    %v180 = vunpack.c.l.b16 %v108
    %v181 = vunpack.c.h.b16 %v108
    %v182 = vunpack.c.l.b16 %v109
    %v183 = vunpack.c.h.b16 %v109
    %v184 = vunpack.c.l.b16 %v110
    %v185 = vunpack.c.h.b16 %v110
    %v186 = vunpack.c.l.b16 %v111
    %v187 = vunpack.c.h.b16 %v111
    %v188 = vunpack.c.l.b16 %v112
    %v189 = vunpack.c.h.b16 %v112
    %v190 = vunpack.c.l.b16 %v113
    %v191 = vunpack.c.h.b16 %v113
    %v192 = vunpack.c.l.b16 %v114
    %v193 = vunpack.c.h.b16 %v114
    %v194 = vunpack.c.l.b16 %v115
    %v195 = vunpack.c.h.b16 %v115
    %v196 = vpack.c.b16 %v166, %v164
    %v197 = vpack.c.b16 %v167, %v165
    %v198 = vpack.c.b16 %v170, %v168
    %v199 = vpack.c.b16 %v171, %v169
    %v200 = vpack.c.b16 %v174, %v172
    %v201 = vpack.c.b16 %v175, %v173
    %v202 = vpack.c.b16 %v178, %v176
    %v203 = vpack.c.b16 %v179, %v177
    %v204 = vpack.c.b16 %v182, %v180
    %v205 = vpack.c.b16 %v183, %v181
    %v206 = vpack.c.b16 %v186, %v184
    %v207 = vpack.c.b16 %v187, %v185
    %v208 = vpack.c.b16 %v190, %v188
    %v209 = vpack.c.b16 %v191, %v189
    %v210 = vpack.c.b16 %v194, %v192
    %v211 = vpack.c.b16 %v195, %v193
    %v260 = vunpack.c.l.b16 %v116
    %v261 = vunpack.c.l.b16 %v117
    %v262 = vunpack.c.l.b16 %v118
    %v263 = vunpack.c.l.b16 %v119
    %v264 = vunpack.c.l.b16 %v120
    %v265 = vunpack.c.l.b16 %v121
    %v266 = vunpack.c.l.b16 %v122
    %v267 = vunpack.c.l.b16 %v123
    %v268 = vunpack.c.l.b16 %v124
    %v269 = vunpack.c.l.b16 %v125
    %v270 = vunpack.c.l.b16 %v126
    %v271 = vunpack.c.l.b16 %v127
    %v272 = vunpack.c.l.b16 %v128
    %v273 = vunpack.c.l.b16 %v129
    %v274 = vunpack.c.l.b16 %v130
    %v275 = vunpack.c.l.b16 %v131
    %v276 = vunpack.c.l.b16 %v132
    %v277 = vunpack.c.l.b16 %v133
    %v278 = vunpack.c.l.b16 %v134
    %v279 = vunpack.c.l.b16 %v135
    %v280 = vunpack.c.l.b16 %v136
    %v281 = vunpack.c.l.b16 %v137
    %v282 = vunpack.c.l.b16 %v138
    %v283 = vunpack.c.l.b16 %v139
    %v284 = vunpack.c.l.b16 %v140
    %v285 = vunpack.c.l.b16 %v141
    %v286 = vunpack.c.l.b16 %v142
    %v287 = vunpack.c.l.b16 %v143
    %v288 = vunpack.c.l.b16 %v144
    %v289 = vunpack.c.l.b16 %v145
    %v290 = vunpack.c.l.b16 %v146
    %v291 = vunpack.c.l.b16 %v147
    %v292 = vpack.c.b16 %v261, %v260
    %v293 = vpack.c.b16 %v263, %v262
    %v294 = vpack.c.b16 %v265, %v264
    %v295 = vpack.c.b16 %v267, %v266
    %v296 = vpack.c.b16 %v269, %v268
    %v297 = vpack.c.b16 %v271, %v270
    %v298 = vpack.c.b16 %v273, %v272
    %v299 = vpack.c.b16 %v275, %v274
    %v300 = vpack.c.b16 %v277, %v276
    %v301 = vpack.c.b16 %v279, %v278
    %v302 = vpack.c.b16 %v281, %v280
    %v303 = vpack.c.b16 %v283, %v282
    %v304 = vpack.c.b16 %v285, %v284
    %v305 = vpack.c.b16 %v287, %v286
    %v306 = vpack.c.b16 %v289, %v288
    %v307 = vpack.c.b16 %v291, %v290
    %324 = vmatprep.subr.bf16.mxu0 0
    %325 = vmatpush1.bf16.msra.mxu0 %v292
    %326 = vmatprep.subr.bf16.mxu0 0
    %327 = vmatpush1.bf16.msra.mxu0 %v293
    %328 = vmatprep.subr.bf16.mxu0 0
    %329 = vmatpush1.bf16.msra.mxu0 %v294
    %330 = vmatprep.subr.bf16.mxu0 0
    %331 = vmatpush1.bf16.msra.mxu0 %v295
    %332 = vmatprep.subr.bf16.mxu0 0
    %333 = vmatpush1.bf16.msra.mxu0 %v296
    %334 = vmatprep.subr.bf16.mxu0 0
    %335 = vmatpush1.bf16.msra.mxu0 %v297
    %336 = vmatprep.subr.bf16.mxu0 0
    %337 = vmatpush1.bf16.msra.mxu0 %v298
    %338 = vmatprep.subr.bf16.mxu0 0
    %339 = vmatpush1.bf16.msra.mxu0 %v299
    %340 = vmatprep.subr.bf16.mxu0 0
    %341 = vmatpush1.bf16.msra.mxu0 %v300
    %342 = vmatprep.subr.bf16.mxu0 0
    %343 = vmatpush1.bf16.msra.mxu0 %v301
    %344 = vmatprep.subr.bf16.mxu0 0
    %345 = vmatpush1.bf16.msra.mxu0 %v302
    %346 = vmatprep.subr.bf16.mxu0 0
    %347 = vmatpush1.bf16.msra.mxu0 %v303
    %348 = vmatprep.subr.bf16.mxu0 0
    %349 = vmatpush1.bf16.msra.mxu0 %v304
    %350 = vmatprep.subr.bf16.mxu0 0
    %351 = vmatpush1.bf16.msra.mxu0 %v305
    %352 = vmatprep.subr.bf16.mxu0 0
    %353 = vmatpush1.bf16.msra.mxu0 %v306
    %354 = vmatprep.subr.bf16.mxu0 0
    %355 = vmatpush1.bf16.msra.mxu0 %v307
    %356 = vmatprep.mubr.bf16.mxu0 %v197
    %357 = vmatmul.mubr.bf16.gmra.mrb[0].mxu0 %v196
    %v358 = vpop.f32.mrb[0].mxu0
    %v359 = vadd.f32 0.0, %v358
    %v360 = vpop.f32.mrb[0].mxu0
    %v361 = vpop.f32.mrb[0].mxu0
    %v362 = vadd.f32 0.0, %v361
    %v363 = vpop.f32.mrb[0].mxu0
    %364 = vmatprep.mubr.bf16.mxu0 %v199
    %365 = vmatmul.mubr.bf16.gmra.mrb[0].mxu0 %v198
    %v366 = vpop.f32.mrb[0].mxu0
    %v367 = vadd.f32 0.0, %v366
    %v368 = vpop.f32.mrb[0].mxu0
    %v369 = vpop.f32.mrb[0].mxu0
    %v370 = vadd.f32 0.0, %v369
    %v371 = vpop.f32.mrb[0].mxu0
    %372 = vmatprep.mubr.bf16.mxu0 %v201
    %373 = vmatmul.mubr.bf16.gmra.mrb[0].mxu0 %v200
    %v374 = vpop.f32.mrb[0].mxu0
    %v375 = vadd.f32 0.0, %v374
    %v376 = vpop.f32.mrb[0].mxu0
    %v377 = vpop.f32.mrb[0].mxu0
    %v378 = vadd.f32 0.0, %v377
    %v379 = vpop.f32.mrb[0].mxu0
    %380 = vmatprep.mubr.bf16.mxu0 %v203
    %381 = vmatmul.mubr.bf16.gmra.mrb[0].mxu0 %v202
    %v382 = vpop.f32.mrb[0].mxu0
    %v383 = vadd.f32 0.0, %v382
    %v384 = vpop.f32.mrb[0].mxu0
    %v385 = vpop.f32.mrb[0].mxu0
    %v386 = vadd.f32 0.0, %v385
    %v387 = vpop.f32.mrb[0].mxu0
    %388 = vmatprep.mubr.bf16.mxu0 %v205
    %389 = vmatmul.mubr.bf16.gmra.mrb[0].mxu0 %v204
    %v390 = vpop.f32.mrb[0].mxu0
    %v391 = vadd.f32 0.0, %v390
    %v392 = vpop.f32.mrb[0].mxu0
    %v393 = vpop.f32.mrb[0].mxu0
    %v394 = vadd.f32 0.0, %v393
    %v395 = vpop.f32.mrb[0].mxu0
    %396 = vmatprep.mubr.bf16.mxu0 %v207
    %397 = vmatmul.mubr.bf16.gmra.mrb[0].mxu0 %v206
    %v398 = vpop.f32.mrb[0].mxu0
    %v399 = vadd.f32 0.0, %v398
    %v400 = vpop.f32.mrb[0].mxu0
    %v401 = vpop.f32.mrb[0].mxu0
    %v402 = vadd.f32 0.0, %v401
    %v403 = vpop.f32.mrb[0].mxu0
    %404 = vmatprep.mubr.bf16.mxu0 %v209
    %405 = vmatmul.mubr.bf16.gmra.mrb[0].mxu0 %v208
    %v406 = vpop.f32.mrb[0].mxu0
    %v407 = vadd.f32 0.0, %v406
    %v408 = vpop.f32.mrb[0].mxu0
    %v409 = vpop.f32.mrb[0].mxu0
    %v410 = vadd.f32 0.0, %v409
    %v411 = vpop.f32.mrb[0].mxu0
    %412 = vmatprep.mubr.bf16.mxu0 %v211
    %413 = vmatmul.mubr.bf16.gmra.mrb[0].mxu0 %v210
    %v414 = vpop.f32.mrb[0].mxu0
    %v415 = vadd.f32 0.0, %v414
    %v416 = vpop.f32.mrb[0].mxu0
    %v417 = vpop.f32.mrb[0].mxu0
    %v418 = vadd.f32 0.0, %v417
    %v419 = vpop.f32.mrb[0].mxu0
    %420 = vdwg.mxu0
    %v421 = vlaneseq
    %v422 = vshrl.u32 %v421, 7
    %v423 = vadd.s32 %v422, 8
    %s424 = smul.u32 0, 16
    %v425 = vstv %s424
    %v426 = vadd.s32 %v422, %v425
    %v427 = vadd.s32 %v423, %v425
    %v428 = vld [vmem:[%s79] sm:$0x1]
    %v429 = vlaneseq
    %v430 = vshrl.u32 %v429, 7
    %v431 = vsub.s32 0, %v430
    %v432 = vrot.slane %v428, %v431
    %vm433 = vcmp.eq.s32.totalorder %v426, %v432
    %vm434 = vcmp.eq.s32.totalorder %v427, %v432
    %v435 = vsel %vm433, 1, 0
    %v436 = vsel %vm434, 1, 0
    %v437 = vcvt.s32.f32 %v435
    %v438 = vcvt.s32.f32 %v436
    %v439 = vpack.c.bf16 %v438, %v437
    %v440 = vld [vmem:[#allocation2 + $0x8] sm:$0xff]
    %v441 = vld [vmem:[#allocation2 + $0x18] sm:$0xff]
    %v442 = vpack.c.bf16 %v362, %v359
    %v443 = vpack.c.bf16 %v370, %v367
    %v444 = vpack.c.bf16 %v378, %v375
    %v445 = vpack.c.bf16 %v386, %v383
    %v446 = vpack.c.bf16 %v394, %v391
    %v447 = vpack.c.bf16 %v402, %v399
    %v448 = vpack.c.bf16 %v410, %v407
    %v449 = vpack.c.bf16 %v418, %v415
    %450 = vmatprep.subr.bf16.mxu0 0
    %451 = vmatpush1.bf16.msra.mxu0 %v442
    %452 = vmatprep.subr.bf16.mxu0 0
    %453 = vmatpush1.bf16.msra.mxu0 %v443
    %454 = vmatprep.subr.bf16.mxu0 0
    %455 = vmatpush1.bf16.msra.mxu0 %v444
    %456 = vmatprep.subr.bf16.mxu0 0
    %457 = vmatpush1.bf16.msra.mxu0 %v445
    %458 = vmatprep.subr.bf16.mxu0 0
    %459 = vmatpush1.bf16.msra.mxu0 %v446
    %460 = vmatprep.subr.bf16.mxu0 0
    %461 = vmatpush1.bf16.msra.mxu0 %v447
    %462 = vmatprep.subr.bf16.mxu0 0
    %463 = vmatpush1.bf16.msra.mxu0 %v448
    %464 = vmatprep.subr.bf16.mxu0 0
    %465 = vmatpush1.bf16.msra.mxu0 %v449
    %466 = vmatprep.subr.bf16.mxu0 0
    %467 = vmatpush1.bf16.msra.mxu0 0
    %468 = vmatprep.subr.bf16.mxu0 0
    %469 = vmatpush1.bf16.msra.mxu0 0
    %470 = vmatprep.subr.bf16.mxu0 0
    %471 = vmatpush1.bf16.msra.mxu0 0
    %472 = vmatprep.subr.bf16.mxu0 0
    %473 = vmatpush1.bf16.msra.mxu0 0
    %474 = vmatprep.subr.bf16.mxu0 0
    %475 = vmatpush1.bf16.msra.mxu0 0
    %476 = vmatprep.subr.bf16.mxu0 0
    %477 = vmatpush1.bf16.msra.mxu0 0
    %478 = vmatprep.subr.bf16.mxu0 0
    %479 = vmatpush1.bf16.msra.mxu0 0
    %480 = vmatprep.subr.bf16.mxu0 0
    %481 = vmatpush1.bf16.msra.mxu0 0
    %482 = vmatprep.mubr.bf16.mxu0 0
    %483 = vmatmul.mubr.bf16.gmra.mrb[0].mxu0 %v439
    %v484 = vpop.f32.mrb[0].mxu0
    %v485 = vadd.f32 0.0, %v484
    %v486 = vpop.f32.mrb[0].mxu0
    %v487 = vpop.f32.mrb[0].mxu0
    %v488 = vadd.f32 0.0, %v487
    %v489 = vpop.f32.mrb[0].mxu0
    %490 = vdwg.mxu0
    %v491 = vadd.f32 %v440, %v485
    %v492 = vadd.f32 %v441, %v488
    %493 = vst [vmem:[#allocation2 + $0x8] sm:$0xff] %v491
    %494 = vst [vmem:[#allocation2 + $0x18] sm:$0xff] %v492
  $region41: #{_forward_core.4} parent=0 // pred_fallthru
    _
  // Predicated region
  $region42: #{_forward_core.4} parent=0 // pred_check
    %p495 = pneg %p83
  $region43: #{_forward_core.4} parent=0 // pred_check_branch
    %497 = sbr.rel (%p495) target = $region45
  $region44: #{_forward_core.4} parent=0 // pred_region
    %v498 = vld [vmem:[%s5] sm:$0xff]
    %v499 = vld [vmem:[%s5 + $0x8] sm:$0xff]
    %vm500 = vcmp.gt.f32.partialorder %v498, 0.0
    %vm501 = vcmp.gt.f32.partialorder %v499, 0.0
    %v502 = vsel %vm500, 1, 0
    %v503 = vsel %vm501, 1, 0
    %v504 = vcvt.s32.f32 %v502
    %v505 = vcvt.s32.f32 %v503
    %v506 = vld [vmem:[#allocation2 + $0x8] sm:$0xff]
    %v507 = vld [vmem:[#allocation2 + $0x18] sm:$0xff]
    %509 = vset.pattern.permute.xlu0 0
    %510 = vperm.xlu0 %509, %v498
    %v511 = vpop.permute.xlu0 %510
    %514 = vset.pattern.permute.xlu0 0
    %515 = vperm.xlu0 %514, %v499
    %v516 = vpop.permute.xlu0 %515
    %v518 = vmul.f32 %v506, %v511
    %v519 = vmul.f32 %v507, %v516
    %v520 = vld [vmem:[%s8] sm:$0x1]
    %522 = vset.pattern.permute.xlu0 0
    %523 = vperm.xlu0 %522, %v504
    %v524 = vpop.permute.xlu0 %523
    %527 = vset.pattern.permute.xlu0 0
    %528 = vperm.xlu0 %527, %v505
    %v529 = vpop.permute.xlu0 %528
    %v532 = vlaneseq
    %v533 = vshrl.u32 %v532, 7
    %v534 = vsub.s32 0, %v533
    %v535 = vrot.slane %v520, %v534
    %v537 = vmul.f32 %v524, %v535
    %v538 = vmul.f32 %v529, %v535
    %v539 = vadd.f32 %v518, %v537
    %v540 = vadd.f32 %v519, %v538
    %541 = vst [vmem:[#allocation2 + $0x8] sm:$0xff] %v539
    %542 = vst [vmem:[#allocation2 + $0x18] sm:$0xff] %v540
    %v543 = vld [vmem:[#allocation2] sm:$0xff]
    %v544 = vld [vmem:[#allocation2 + $0x8] sm:$0xff]
    %v545 = vld [vmem:[#allocation2 + $0x10] sm:$0xff]
    %v546 = vld [vmem:[#allocation2 + $0x18] sm:$0xff]
    %v547 = vpack.c.bf16 %v545, %v543
    %v548 = vpack.c.bf16 %v546, %v544
    %v549 = vld [vmem:[%s7] sm:$0xf]
    %v550 = vld [vmem:[%s7 + $0x4] sm:$0xf]
    %v551 = vld [vmem:[%s7 + $0x8] sm:$0xf]
    %v552 = vld [vmem:[%s7 + $0xc] sm:$0xf]
    %v553 = vld [vmem:[%s7 + $0x10] sm:$0xf]
    %v554 = vld [vmem:[%s7 + $0x14] sm:$0xf]
    %v555 = vld [vmem:[%s7 + $0x18] sm:$0xf]
    %v556 = vld [vmem:[%s7 + $0x1c] sm:$0xf]
    %v557 = vld [vmem:[%s7 + $0x20] sm:$0xf]
    %v558 = vld [vmem:[%s7 + $0x24] sm:$0xf]
    %v559 = vld [vmem:[%s7 + $0x28] sm:$0xf]
    %v560 = vld [vmem:[%s7 + $0x2c] sm:$0xf]
    %v561 = vld [vmem:[%s7 + $0x30] sm:$0xf]
    %v562 = vld [vmem:[%s7 + $0x34] sm:$0xf]
    %v563 = vld [vmem:[%s7 + $0x38] sm:$0xf]
    %v564 = vld [vmem:[%s7 + $0x3c] sm:$0xf]
    %v565 = vld [vmem:[%s7 + $0x40] sm:$0xf]
    %v566 = vld [vmem:[%s7 + $0x44] sm:$0xf]
    %v567 = vld [vmem:[%s7 + $0x48] sm:$0xf]
    %v568 = vld [vmem:[%s7 + $0x4c] sm:$0xf]
    %v569 = vld [vmem:[%s7 + $0x50] sm:$0xf]
    %v570 = vld [vmem:[%s7 + $0x54] sm:$0xf]
    %v571 = vld [vmem:[%s7 + $0x58] sm:$0xf]
    %v572 = vld [vmem:[%s7 + $0x5c] sm:$0xf]
    %v573 = vld [vmem:[%s7 + $0x60] sm:$0xf]
    %v574 = vld [vmem:[%s7 + $0x64] sm:$0xf]
    %v575 = vld [vmem:[%s7 + $0x68] sm:$0xf]
    %v576 = vld [vmem:[%s7 + $0x6c] sm:$0xf]
    %v577 = vld [vmem:[%s7 + $0x70] sm:$0xf]
    %v578 = vld [vmem:[%s7 + $0x74] sm:$0xf]
    %v579 = vld [vmem:[%s7 + $0x78] sm:$0xf]
    %v580 = vld [vmem:[%s7 + $0x7c] sm:$0xf]
    %v581 = vld [vmem:[%s9] sm:$0x1]
    %v583 = vlaneseq
    %v584 = vshrl.u32 %v583, 7
    %v585 = vsub.s32 0, %v584
    %v586 = vrot.slane %v581, %v585
    %v620 = vunpack.c.l.b16 %v549
    %v621 = vunpack.c.l.b16 %v550
    %v622 = vunpack.c.l.b16 %v551
    %v623 = vunpack.c.l.b16 %v552
    %v624 = vunpack.c.l.b16 %v553
    %v625 = vunpack.c.l.b16 %v554
    %v626 = vunpack.c.l.b16 %v555
    %v627 = vunpack.c.l.b16 %v556
    %v628 = vunpack.c.l.b16 %v557
    %v629 = vunpack.c.l.b16 %v558
    %v630 = vunpack.c.l.b16 %v559
    %v631 = vunpack.c.l.b16 %v560
    %v632 = vunpack.c.l.b16 %v561
    %v633 = vunpack.c.l.b16 %v562
    %v634 = vunpack.c.l.b16 %v563
    %v635 = vunpack.c.l.b16 %v564
    %v636 = vunpack.c.l.b16 %v565
    %v637 = vunpack.c.l.b16 %v566
    %v638 = vunpack.c.l.b16 %v567
    %v639 = vunpack.c.l.b16 %v568
    %v640 = vunpack.c.l.b16 %v569
    %v641 = vunpack.c.l.b16 %v570
    %v642 = vunpack.c.l.b16 %v571
    %v643 = vunpack.c.l.b16 %v572
    %v644 = vunpack.c.l.b16 %v573
    %v645 = vunpack.c.l.b16 %v574
    %v646 = vunpack.c.l.b16 %v575
    %v647 = vunpack.c.l.b16 %v576
    %v648 = vunpack.c.l.b16 %v577
    %v649 = vunpack.c.l.b16 %v578
    %v650 = vunpack.c.l.b16 %v579
    %v651 = vunpack.c.l.b16 %v580
    %v652 = vpack.c.b16 %v621, %v620
    %v653 = vpack.c.b16 %v623, %v622
    %v654 = vpack.c.b16 %v625, %v624
    %v655 = vpack.c.b16 %v627, %v626
    %v656 = vpack.c.b16 %v629, %v628
    %v657 = vpack.c.b16 %v631, %v630
    %v658 = vpack.c.b16 %v633, %v632
    %v659 = vpack.c.b16 %v635, %v634
    %v660 = vpack.c.b16 %v637, %v636
    %v661 = vpack.c.b16 %v639, %v638
    %v662 = vpack.c.b16 %v641, %v640
    %v663 = vpack.c.b16 %v643, %v642
    %v664 = vpack.c.b16 %v645, %v644
    %v665 = vpack.c.b16 %v647, %v646
    %v666 = vpack.c.b16 %v649, %v648
    %v667 = vpack.c.b16 %v651, %v650
    %684 = vmatprep.subr.bf16.mxu0 0
    %685 = vmatpush1.bf16.msra.mxu0 %v652
    %686 = vmatprep.subr.bf16.mxu0 0
    %687 = vmatpush1.bf16.msra.mxu0 %v653
    %688 = vmatprep.subr.bf16.mxu0 0
    %689 = vmatpush1.bf16.msra.mxu0 %v654
    %690 = vmatprep.subr.bf16.mxu0 0
    %691 = vmatpush1.bf16.msra.mxu0 %v655
    %692 = vmatprep.subr.bf16.mxu0 0
    %693 = vmatpush1.bf16.msra.mxu0 %v656
    %694 = vmatprep.subr.bf16.mxu0 0
    %695 = vmatpush1.bf16.msra.mxu0 %v657
    %696 = vmatprep.subr.bf16.mxu0 0
    %697 = vmatpush1.bf16.msra.mxu0 %v658
    %698 = vmatprep.subr.bf16.mxu0 0
    %699 = vmatpush1.bf16.msra.mxu0 %v659
    %700 = vmatprep.subr.bf16.mxu0 0
    %701 = vmatpush1.bf16.msra.mxu0 %v660
    %702 = vmatprep.subr.bf16.mxu0 0
    %703 = vmatpush1.bf16.msra.mxu0 %v661
    %704 = vmatprep.subr.bf16.mxu0 0
    %705 = vmatpush1.bf16.msra.mxu0 %v662
    %706 = vmatprep.subr.bf16.mxu0 0
    %707 = vmatpush1.bf16.msra.mxu0 %v663
    %708 = vmatprep.subr.bf16.mxu0 0
    %709 = vmatpush1.bf16.msra.mxu0 %v664
    %710 = vmatprep.subr.bf16.mxu0 0
    %711 = vmatpush1.bf16.msra.mxu0 %v665
    %712 = vmatprep.subr.bf16.mxu0 0
    %713 = vmatpush1.bf16.msra.mxu0 %v666
    %714 = vmatprep.subr.bf16.mxu0 0
    %715 = vmatpush1.bf16.msra.mxu0 %v667
    %716 = vmatprep.mubr.bf16.mxu0 %v548
    %717 = vmatmul.mubr.bf16.gmra.mrb[0].mxu0 %v547
    %v718 = vpop.f32.mrb[0].mxu0
    %v719 = vadd.f32 %v586, %v718
    %v720 = vpop.f32.mrb[0].mxu0
    %v721 = vpop.f32.mrb[0].mxu0
    %v722 = vadd.f32 %v586, %v721
    %v723 = vpop.f32.mrb[0].mxu0
    %724 = vdwg.mxu0
    %v725 = vmax.f32 %v719, 0.0
    %v726 = vmax.f32 %v722, 0.0
    %v727 = vpack.c.bf16 %v726, %v725
    %v729 = vunpack.c.l.b16 %v727
    %v730 = vunpack.c.h.b16 %v727
    %v731 = vpack.c.b16 %v729, %v729
    %v732 = vpack.c.b16 %v730, %v730
    %735 = vst [vmem:[%s10] sm:$0xf] %v731
    %736 = vst [vmem:[%s10 + $0x4] sm:$0xf] %v732
  $region45: #{_forward_core.4} parent=0 // pred_fallthru
    _
  // Predicated region
  $region46: #{_forward_core.4} parent=0 // pred_check
    _
  $region47: #{_forward_core.4} parent=0 // pred_check_branch
    %738 = sbr.rel (0) target = $region49
  $region48: #{_forward_core.4} parent=0 // pred_region
    _
  $region49: #{_forward_core.4} parent=0 // pred_fallthru
    _
  // Predicated region
  $region50: #{_forward_core.4} parent=0 // pred_check
    _
  $region51: #{_forward_core.4} parent=0 // pred_check_branch
    %740 = sbr.rel (0) target = $region53
  $region52: #{_forward_core.4} parent=0 // pred_region
    _
  $region53: #{_forward_core.4} parent=0 // pred_fallthru
    _

// kernel: _forward_core.3
$region0: #{_forward_core.3}
  #allocation0 [shape = 'u32[]', space=smem, size = 0x4, offset = 0x4, fixed_abs, tag = 'smem constant byte address 0x4 - core index']
  #allocation1 [shape = 'u32[144,128]{1,0:T(1,128)}', space=vmem, size = 0x12000, scoped, tag = 'internal scratch']
  #allocation2 [shape = 'f32[16,256]{1,0:T(8,128)}', space=vmem, size = 0x4000, scoped, tag = 'scratch operand']
  #allocation3 [shape = 's32[1]{0}', space=sflag, size = 0x4, scoped, tag = 'scoped memory for _forward_core.3']
  #allocation4 [shape = 's32[1]{0:T(128)S(6)}', space=smem, size = 0x200, scoped, tag = 'prefetched SMEM operand 0']
  #allocation5 [shape = 's32[1]{0:T(128)S(6)}', space=smem, size = 0x200, scoped, tag = 'prefetched SMEM operand 1']
  %s0 = inlined_call_operand.<no memory space> [shape: s32[1], index: 0, kind: input, shape index: {}]
  %s1 = inlined_call_operand.<no memory space> [shape: s32[1], index: 1, kind: input, shape index: {}]
  %s2 = inlined_call_operand.vmem [shape: bf16[128,128], index: 2, kind: input, shape index: {}]
  %s3 = inlined_call_operand.vmem [shape: s32[1,128], index: 3, kind: input, shape index: {}]
  %s4 = inlined_call_operand.vmem [shape: bf16[16,128], index: 4, kind: input, shape index: {}]
  %s5 = inlined_call_operand.vmem [shape: f32[16,1], index: 5, kind: input, shape index: {}]
  %s6 = inlined_call_operand.vmem [shape: bf16[128,128], index: 6, kind: input, shape index: {}]
  %s7 = inlined_call_operand.vmem [shape: bf16[256,128], index: 7, kind: input, shape index: {}]
  %s8 = inlined_call_operand.vmem [shape: f32[1,128], index: 8, kind: input, shape index: {}]
  %s9 = inlined_call_operand.vmem [shape: f32[1,128], index: 9, kind: input, shape index: {}]
  %s10 = inlined_call_operand.vmem [shape: bf16[16,128], index: 10, kind: output, shape index: {}]
  %s11 = sld [smem:[#allocation0]]
  $region54: #{_forward_core.3} parent=0
    _
  %s13 = ssub.s32 1, %s11
  %s14 = scalar_select 0, %s13, %s11
  %15 = sst [smem:[#allocation4]] %s0
  %16 = sst [smem:[#allocation5]] %s1
  // Predicated region
  $region2: #{_forward_core.3} parent=0 // pred_check
    _
  $region3: #{_forward_core.3} parent=0 // pred_check_branch
    %18 = sbr.rel (0) target = $region5
  $region4: #{_forward_core.3} parent=0 // pred_region
    %s19 = sadd.s32 0, 0
    %s20 = sld [smem:[#allocation4 + %s19]]
    %s21 = smul.u32 16, %s20
    %p22 = scmp.lt.s32.totalorder %s21, 15
    %s23 = scalar_select %p22, %s21, 15
    %s24 = smul.addr %s23, 4
    %s25 = scalar_lea.vmem %s2, %s24
    %s26 = sadd.s32 0, 0
    %s27 = sld [smem:[#allocation4 + %s26]]
    %s28 = smul.u32 16, %s27
  $region5: #{_forward_core.3} parent=0 // pred_fallthru
    _
  // Predicated region
  $region6: #{_forward_core.3} parent=0 // pred_check
    _
  $region7: #{_forward_core.3} parent=0 // pred_check_branch
    %30 = sbr.rel (0) target = $region9
  $region8: #{_forward_core.3} parent=0 // pred_region
    %s31 = sadd.s32 0, 0
    %s32 = sld [smem:[#allocation4 + %s31]]
    %p33 = scmp.lt.s32.totalorder %s32, 0
    %s34 = scalar_select %p33, %s32, 0
    %s35 = scalar_lea.vmem %s3, %s34
    %s36 = sadd.s32 0, 0
    %s37 = sld [smem:[#allocation4 + %s36]]
  $region9: #{_forward_core.3} parent=0 // pred_fallthru
    _
  // Predicated region
  $region10: #{_forward_core.3} parent=0 // pred_check
    _
  $region11: #{_forward_core.3} parent=0 // pred_check_branch
    %39 = sbr.rel (0) target = $region13
  $region12: #{_forward_core.3} parent=0 // pred_region
    _
  $region13: #{_forward_core.3} parent=0 // pred_fallthru
    _
  // Predicated region
  $region14: #{_forward_core.3} parent=0 // pred_check
    _
  $region15: #{_forward_core.3} parent=0 // pred_check_branch
    %41 = sbr.rel (0) target = $region17
  $region16: #{_forward_core.3} parent=0 // pred_region
    _
  $region17: #{_forward_core.3} parent=0 // pred_fallthru
    _
  // Predicated region
  $region18: #{_forward_core.3} parent=0 // pred_check
    _
  $region19: #{_forward_core.3} parent=0 // pred_check_branch
    %43 = sbr.rel (0) target = $region21
  $region20: #{_forward_core.3} parent=0 // pred_region
    _
  $region21: #{_forward_core.3} parent=0 // pred_fallthru
    _
  // Predicated region
  $region22: #{_forward_core.3} parent=0 // pred_check
    _
  $region23: #{_forward_core.3} parent=0 // pred_check_branch
    %45 = sbr.rel (0) target = $region25
  $region24: #{_forward_core.3} parent=0 // pred_region
    _
  $region25: #{_forward_core.3} parent=0 // pred_fallthru
    _
  // Predicated region
  $region26: #{_forward_core.3} parent=0 // pred_check
    _
  $region27: #{_forward_core.3} parent=0 // pred_check_branch
    %47 = sbr.rel (0) target = $region29
  $region28: #{_forward_core.3} parent=0 // pred_region
    _
  $region29: #{_forward_core.3} parent=0 // pred_fallthru
    _
  // Predicated region
  $region30: #{_forward_core.3} parent=0 // pred_check
    _
  $region31: #{_forward_core.3} parent=0 // pred_check_branch
    %49 = sbr.rel (0) target = $region33
  $region32: #{_forward_core.3} parent=0 // pred_region
    _
  $region33: #{_forward_core.3} parent=0 // pred_fallthru
    _
  %s50 = sadd.s32 0, 0
  %s51 = sld [smem:[#allocation4 + %s50]]
  %s52 = smul.u32 16, %s51
  %p53 = scmp.lt.s32.totalorder %s52, 15
  %s54 = scalar_select %p53, %s52, 15
  %s55 = smul.addr %s54, 4
  %s56 = scalar_lea.vmem %s2, %s55
  %s57 = sadd.s32 0, 0
  %s58 = sld [smem:[#allocation4 + %s57]]
  %p59 = scmp.lt.s32.totalorder %s58, 0
  %s60 = scalar_select %p59, %s58, 0
  %s61 = scalar_lea.vmem %s3, %s60
  %s62 = sadd.s32 0, 0
  %s63 = sld [smem:[#allocation4 + %s62]]
  %s64 = smul.u32 16, %s63
  %p65 = scmp.lt.s32.totalorder %s64, 15
  %s66 = scalar_select %p65, %s64, 15
  %s67 = smul.addr %s66, 4
  %s68 = scalar_lea.vmem %s2, %s67
  %s69 = sadd.s32 0, 0
  %s70 = sld [smem:[#allocation4 + %s69]]
  %s71 = smul.u32 16, %s70
  %s72 = sadd.s32 0, 0
  %s73 = sld [smem:[#allocation4 + %s72]]
  %p74 = scmp.lt.s32.totalorder %s73, 0
  %s75 = scalar_select %p74, %s73, 0
  %s76 = scalar_lea.vmem %s3, %s75
  %s77 = sadd.s32 0, 0
  %s78 = sld [smem:[#allocation4 + %s77]]
  %p80 = scmp.eq.s32.totalorder 0, 0
  // Predicated region
  $region34: #{_forward_core.3} parent=0 // pred_check
    %p81 = pneg %p80
  $region35: #{_forward_core.3} parent=0 // pred_check_branch
    %83 = sbr.rel (%p81) target = $region37
  $region36: #{_forward_core.3} parent=0 // pred_region
    %v84 = vld [vmem:[%s4] sm:$0xf]
    %v85 = vld [vmem:[%s4 + $0x4] sm:$0xf]
    %v86 = vunpack.c.l.bf16 %v84
    %v87 = vunpack.c.l.bf16 %v85
    %88 = vst [vmem:[#allocation2] sm:$0xff] %v86
    %89 = vst [vmem:[#allocation2 + $0x10] sm:$0xff] %v87
    %90 = vst [vmem:[#allocation2 + $0x8] sm:$0xff] 0.0
    %91 = vst [vmem:[#allocation2 + $0x18] sm:$0xff] 0.0
  $region37: #{_forward_core.3} parent=0 // pred_fallthru
    _
  %s92 = sld [smem:[#allocation5]]
  %p93 = scmp.lt.s32.totalorder 0, %s92
  // Predicated region
  $region38: #{_forward_core.3} parent=0 // pred_check
    %p94 = pneg %p93
  $region39: #{_forward_core.3} parent=0 // pred_check_branch
    %96 = sbr.rel (%p94) target = $region41
  $region40: #{_forward_core.3} parent=0 // pred_region
    %v97 = vld [vmem:[%s68] sm:$0xf]
    %v98 = vld [vmem:[%s68 + $0x4] sm:$0xf]
    %v99 = vld [vmem:[%s68 + $0x8] sm:$0xf]
    %v100 = vld [vmem:[%s68 + $0xc] sm:$0xf]
    %v101 = vld [vmem:[%s68 + $0x10] sm:$0xf]
    %v102 = vld [vmem:[%s68 + $0x14] sm:$0xf]
    %v103 = vld [vmem:[%s68 + $0x18] sm:$0xf]
    %v104 = vld [vmem:[%s68 + $0x1c] sm:$0xf]
    %v105 = vld [vmem:[%s68 + $0x20] sm:$0xf]
    %v106 = vld [vmem:[%s68 + $0x24] sm:$0xf]
    %v107 = vld [vmem:[%s68 + $0x28] sm:$0xf]
    %v108 = vld [vmem:[%s68 + $0x2c] sm:$0xf]
    %v109 = vld [vmem:[%s68 + $0x30] sm:$0xf]
    %v110 = vld [vmem:[%s68 + $0x34] sm:$0xf]
    %v111 = vld [vmem:[%s68 + $0x38] sm:$0xf]
    %v112 = vld [vmem:[%s68 + $0x3c] sm:$0xf]
    %v113 = vld [vmem:[%s6] sm:$0xf]
    %v114 = vld [vmem:[%s6 + $0x4] sm:$0xf]
    %v115 = vld [vmem:[%s6 + $0x8] sm:$0xf]
    %v116 = vld [vmem:[%s6 + $0xc] sm:$0xf]
    %v117 = vld [vmem:[%s6 + $0x10] sm:$0xf]
    %v118 = vld [vmem:[%s6 + $0x14] sm:$0xf]
    %v119 = vld [vmem:[%s6 + $0x18] sm:$0xf]
    %v120 = vld [vmem:[%s6 + $0x1c] sm:$0xf]
    %v121 = vld [vmem:[%s6 + $0x20] sm:$0xf]
    %v122 = vld [vmem:[%s6 + $0x24] sm:$0xf]
    %v123 = vld [vmem:[%s6 + $0x28] sm:$0xf]
    %v124 = vld [vmem:[%s6 + $0x2c] sm:$0xf]
    %v125 = vld [vmem:[%s6 + $0x30] sm:$0xf]
    %v126 = vld [vmem:[%s6 + $0x34] sm:$0xf]
    %v127 = vld [vmem:[%s6 + $0x38] sm:$0xf]
    %v128 = vld [vmem:[%s6 + $0x3c] sm:$0xf]
    %v145 = vunpack.c.l.b16 %v97
    %v146 = vunpack.c.l.b16 %v98
    %v147 = vunpack.c.l.b16 %v99
    %v148 = vunpack.c.l.b16 %v100
    %v149 = vunpack.c.l.b16 %v101
    %v150 = vunpack.c.l.b16 %v102
    %v151 = vunpack.c.l.b16 %v103
    %v152 = vunpack.c.l.b16 %v104
    %v153 = vunpack.c.l.b16 %v105
    %v154 = vunpack.c.l.b16 %v106
    %v155 = vunpack.c.l.b16 %v107
    %v156 = vunpack.c.l.b16 %v108
    %v157 = vunpack.c.l.b16 %v109
    %v158 = vunpack.c.l.b16 %v110
    %v159 = vunpack.c.l.b16 %v111
    %v160 = vunpack.c.l.b16 %v112
    %v161 = vpack.c.b16 %v146, %v145
    %v162 = vpack.c.b16 %v148, %v147
    %v163 = vpack.c.b16 %v150, %v149
    %v164 = vpack.c.b16 %v152, %v151
    %v165 = vpack.c.b16 %v154, %v153
    %v166 = vpack.c.b16 %v156, %v155
    %v167 = vpack.c.b16 %v158, %v157
    %v168 = vpack.c.b16 %v160, %v159
    %v193 = vunpack.c.l.b16 %v113
    %v194 = vunpack.c.l.b16 %v114
    %v195 = vunpack.c.l.b16 %v115
    %v196 = vunpack.c.l.b16 %v116
    %v197 = vunpack.c.l.b16 %v117
    %v198 = vunpack.c.l.b16 %v118
    %v199 = vunpack.c.l.b16 %v119
    %v200 = vunpack.c.l.b16 %v120
    %v201 = vunpack.c.l.b16 %v121
    %v202 = vunpack.c.l.b16 %v122
    %v203 = vunpack.c.l.b16 %v123
    %v204 = vunpack.c.l.b16 %v124
    %v205 = vunpack.c.l.b16 %v125
    %v206 = vunpack.c.l.b16 %v126
    %v207 = vunpack.c.l.b16 %v127
    %v208 = vunpack.c.l.b16 %v128
    %v209 = vpack.c.b16 %v194, %v193
    %v210 = vpack.c.b16 %v196, %v195
    %v211 = vpack.c.b16 %v198, %v197
    %v212 = vpack.c.b16 %v200, %v199
    %v213 = vpack.c.b16 %v202, %v201
    %v214 = vpack.c.b16 %v204, %v203
    %v215 = vpack.c.b16 %v206, %v205
    %v216 = vpack.c.b16 %v208, %v207
    %225 = vmatprep.subr.bf16.mxu0 0
    %226 = vmatpush1.bf16.msra.mxu0 %v209
    %227 = vmatprep.subr.bf16.mxu0 0
    %228 = vmatpush1.bf16.msra.mxu0 %v210
    %229 = vmatprep.subr.bf16.mxu0 0
    %230 = vmatpush1.bf16.msra.mxu0 %v211
    %231 = vmatprep.subr.bf16.mxu0 0
    %232 = vmatpush1.bf16.msra.mxu0 %v212
    %233 = vmatprep.subr.bf16.mxu0 0
    %234 = vmatpush1.bf16.msra.mxu0 %v213
    %235 = vmatprep.subr.bf16.mxu0 0
    %236 = vmatpush1.bf16.msra.mxu0 %v214
    %237 = vmatprep.subr.bf16.mxu0 0
    %238 = vmatpush1.bf16.msra.mxu0 %v215
    %239 = vmatprep.subr.bf16.mxu0 0
    %240 = vmatpush1.bf16.msra.mxu0 %v216
    %241 = vmatprep.subr.bf16.mxu0 0
    %242 = vmatpush1.bf16.msra.mxu0 0
    %243 = vmatprep.subr.bf16.mxu0 0
    %244 = vmatpush1.bf16.msra.mxu0 0
    %245 = vmatprep.subr.bf16.mxu0 0
    %246 = vmatpush1.bf16.msra.mxu0 0
    %247 = vmatprep.subr.bf16.mxu0 0
    %248 = vmatpush1.bf16.msra.mxu0 0
    %249 = vmatprep.subr.bf16.mxu0 0
    %250 = vmatpush1.bf16.msra.mxu0 0
    %251 = vmatprep.subr.bf16.mxu0 0
    %252 = vmatpush1.bf16.msra.mxu0 0
    %253 = vmatprep.subr.bf16.mxu0 0
    %254 = vmatpush1.bf16.msra.mxu0 0
    %255 = vmatprep.subr.bf16.mxu0 0
    %256 = vmatpush1.bf16.msra.mxu0 0
    %257 = vmatprep.mubr.bf16.mxu0 0
    %258 = vmatmul.mubr.bf16.gmra.mrb[0].mxu0 %v161
    %v259 = vpop.f32.mrb[0].mxu0
    %v260 = vadd.f32 0.0, %v259
    %v261 = vpop.f32.mrb[0].mxu0
    %v262 = vpop.f32.mrb[0].mxu0
    %v263 = vadd.f32 0.0, %v262
    %v264 = vpop.f32.mrb[0].mxu0
    %265 = vmatprep.mubr.bf16.mxu0 0
    %266 = vmatmul.mubr.bf16.gmra.mrb[0].mxu0 %v162
    %v267 = vpop.f32.mrb[0].mxu0
    %v268 = vadd.f32 0.0, %v267
    %v269 = vpop.f32.mrb[0].mxu0
    %v270 = vpop.f32.mrb[0].mxu0
    %v271 = vadd.f32 0.0, %v270
    %v272 = vpop.f32.mrb[0].mxu0
    %273 = vmatprep.mubr.bf16.mxu0 0
    %274 = vmatmul.mubr.bf16.gmra.mrb[0].mxu0 %v163
    %v275 = vpop.f32.mrb[0].mxu0
    %v276 = vadd.f32 0.0, %v275
    %v277 = vpop.f32.mrb[0].mxu0
    %v278 = vpop.f32.mrb[0].mxu0
    %v279 = vadd.f32 0.0, %v278
    %v280 = vpop.f32.mrb[0].mxu0
    %281 = vmatprep.mubr.bf16.mxu0 0
    %282 = vmatmul.mubr.bf16.gmra.mrb[0].mxu0 %v164
    %v283 = vpop.f32.mrb[0].mxu0
    %v284 = vadd.f32 0.0, %v283
    %v285 = vpop.f32.mrb[0].mxu0
    %v286 = vpop.f32.mrb[0].mxu0
    %v287 = vadd.f32 0.0, %v286
    %v288 = vpop.f32.mrb[0].mxu0
    %289 = vmatprep.mubr.bf16.mxu0 0
    %290 = vmatmul.mubr.bf16.gmra.mrb[0].mxu0 %v165
    %v291 = vpop.f32.mrb[0].mxu0
    %v292 = vadd.f32 0.0, %v291
    %v293 = vpop.f32.mrb[0].mxu0
    %v294 = vpop.f32.mrb[0].mxu0
    %v295 = vadd.f32 0.0, %v294
    %v296 = vpop.f32.mrb[0].mxu0
    %297 = vmatprep.mubr.bf16.mxu0 0
    %298 = vmatmul.mubr.bf16.gmra.mrb[0].mxu0 %v166
    %v299 = vpop.f32.mrb[0].mxu0
    %v300 = vadd.f32 0.0, %v299
    %v301 = vpop.f32.mrb[0].mxu0
    %v302 = vpop.f32.mrb[0].mxu0
    %v303 = vadd.f32 0.0, %v302
    %v304 = vpop.f32.mrb[0].mxu0
    %305 = vmatprep.mubr.bf16.mxu0 0
    %306 = vmatmul.mubr.bf16.gmra.mrb[0].mxu0 %v167
    %v307 = vpop.f32.mrb[0].mxu0
    %v308 = vadd.f32 0.0, %v307
    %v309 = vpop.f32.mrb[0].mxu0
    %v310 = vpop.f32.mrb[0].mxu0
    %v311 = vadd.f32 0.0, %v310
    %v312 = vpop.f32.mrb[0].mxu0
    %313 = vmatprep.mubr.bf16.mxu0 0
    %314 = vmatmul.mubr.bf16.gmra.mrb[0].mxu0 %v168
    %v315 = vpop.f32.mrb[0].mxu0
    %v316 = vadd.f32 0.0, %v315
    %v317 = vpop.f32.mrb[0].mxu0
    %v318 = vpop.f32.mrb[0].mxu0
    %v319 = vadd.f32 0.0, %v318
    %v320 = vpop.f32.mrb[0].mxu0
    %321 = vdwg.mxu0
    %v322 = vlaneseq
    %v323 = vshrl.u32 %v322, 7
    %v324 = vadd.s32 %v323, 8
    %s325 = smul.u32 0, 16
    %v326 = vstv %s325
    %v327 = vadd.s32 %v323, %v326
    %v328 = vadd.s32 %v324, %v326
    %v329 = vld [vmem:[%s76] sm:$0x1]
    %v330 = vlaneseq
    %v331 = vshrl.u32 %v330, 7
    %v332 = vsub.s32 0, %v331
    %v333 = vrot.slane %v329, %v332
    %vm334 = vcmp.eq.s32.totalorder %v327, %v333
    %vm335 = vcmp.eq.s32.totalorder %v328, %v333
    %v336 = vsel %vm334, 1, 0
    %v337 = vsel %vm335, 1, 0
    %v338 = vcvt.s32.f32 %v336
    %v339 = vcvt.s32.f32 %v337
    %v340 = vpack.c.bf16 %v339, %v338
    %v341 = vld [vmem:[#allocation2 + $0x8] sm:$0xff]
    %v342 = vld [vmem:[#allocation2 + $0x18] sm:$0xff]
    %v343 = vpack.c.bf16 %v263, %v260
    %v344 = vpack.c.bf16 %v271, %v268
    %v345 = vpack.c.bf16 %v279, %v276
    %v346 = vpack.c.bf16 %v287, %v284
    %v347 = vpack.c.bf16 %v295, %v292
    %v348 = vpack.c.bf16 %v303, %v300
    %v349 = vpack.c.bf16 %v311, %v308
    %v350 = vpack.c.bf16 %v319, %v316
    %351 = vmatprep.subr.bf16.mxu0 0
    %352 = vmatpush1.bf16.msra.mxu0 %v343
    %353 = vmatprep.subr.bf16.mxu0 0
    %354 = vmatpush1.bf16.msra.mxu0 %v344
    %355 = vmatprep.subr.bf16.mxu0 0
    %356 = vmatpush1.bf16.msra.mxu0 %v345
    %357 = vmatprep.subr.bf16.mxu0 0
    %358 = vmatpush1.bf16.msra.mxu0 %v346
    %359 = vmatprep.subr.bf16.mxu0 0
    %360 = vmatpush1.bf16.msra.mxu0 %v347
    %361 = vmatprep.subr.bf16.mxu0 0
    %362 = vmatpush1.bf16.msra.mxu0 %v348
    %363 = vmatprep.subr.bf16.mxu0 0
    %364 = vmatpush1.bf16.msra.mxu0 %v349
    %365 = vmatprep.subr.bf16.mxu0 0
    %366 = vmatpush1.bf16.msra.mxu0 %v350
    %367 = vmatprep.subr.bf16.mxu0 0
    %368 = vmatpush1.bf16.msra.mxu0 0
    %369 = vmatprep.subr.bf16.mxu0 0
    %370 = vmatpush1.bf16.msra.mxu0 0
    %371 = vmatprep.subr.bf16.mxu0 0
    %372 = vmatpush1.bf16.msra.mxu0 0
    %373 = vmatprep.subr.bf16.mxu0 0
    %374 = vmatpush1.bf16.msra.mxu0 0
    %375 = vmatprep.subr.bf16.mxu0 0
    %376 = vmatpush1.bf16.msra.mxu0 0
    %377 = vmatprep.subr.bf16.mxu0 0
    %378 = vmatpush1.bf16.msra.mxu0 0
    %379 = vmatprep.subr.bf16.mxu0 0
    %380 = vmatpush1.bf16.msra.mxu0 0
    %381 = vmatprep.subr.bf16.mxu0 0
    %382 = vmatpush1.bf16.msra.mxu0 0
    %383 = vmatprep.mubr.bf16.mxu0 0
    %384 = vmatmul.mubr.bf16.gmra.mrb[0].mxu0 %v340
    %v385 = vpop.f32.mrb[0].mxu0
    %v386 = vadd.f32 0.0, %v385
    %v387 = vpop.f32.mrb[0].mxu0
    %v388 = vpop.f32.mrb[0].mxu0
    %v389 = vadd.f32 0.0, %v388
    %v390 = vpop.f32.mrb[0].mxu0
    %391 = vdwg.mxu0
    %v392 = vadd.f32 %v341, %v386
    %v393 = vadd.f32 %v342, %v389
    %394 = vst [vmem:[#allocation2 + $0x8] sm:$0xff] %v392
    %395 = vst [vmem:[#allocation2 + $0x18] sm:$0xff] %v393
  $region41: #{_forward_core.3} parent=0 // pred_fallthru
    _
  // Predicated region
  $region42: #{_forward_core.3} parent=0 // pred_check
    %p396 = pneg %p80
  $region43: #{_forward_core.3} parent=0 // pred_check_branch
    %398 = sbr.rel (%p396) target = $region45
  $region44: #{_forward_core.3} parent=0 // pred_region
    %v399 = vld [vmem:[%s5] sm:$0xff]
    %v400 = vld [vmem:[%s5 + $0x8] sm:$0xff]
    %vm401 = vcmp.gt.f32.partialorder %v399, 0.0
    %vm402 = vcmp.gt.f32.partialorder %v400, 0.0
    %v403 = vsel %vm401, 1, 0
    %v404 = vsel %vm402, 1, 0
    %v405 = vcvt.s32.f32 %v403
    %v406 = vcvt.s32.f32 %v404
    %v407 = vld [vmem:[#allocation2 + $0x8] sm:$0xff]
    %v408 = vld [vmem:[#allocation2 + $0x18] sm:$0xff]
    %410 = vset.pattern.permute.xlu0 0
    %411 = vperm.xlu0 %410, %v399
    %v412 = vpop.permute.xlu0 %411
    %415 = vset.pattern.permute.xlu0 0
    %416 = vperm.xlu0 %415, %v400
    %v417 = vpop.permute.xlu0 %416
    %v419 = vmul.f32 %v407, %v412
    %v420 = vmul.f32 %v408, %v417
    %v421 = vld [vmem:[%s8] sm:$0x1]
    %423 = vset.pattern.permute.xlu0 0
    %424 = vperm.xlu0 %423, %v405
    %v425 = vpop.permute.xlu0 %424
    %428 = vset.pattern.permute.xlu0 0
    %429 = vperm.xlu0 %428, %v406
    %v430 = vpop.permute.xlu0 %429
    %v433 = vlaneseq
    %v434 = vshrl.u32 %v433, 7
    %v435 = vsub.s32 0, %v434
    %v436 = vrot.slane %v421, %v435
    %v438 = vmul.f32 %v425, %v436
    %v439 = vmul.f32 %v430, %v436
    %v440 = vadd.f32 %v419, %v438
    %v441 = vadd.f32 %v420, %v439
    %442 = vst [vmem:[#allocation2 + $0x8] sm:$0xff] %v440
    %443 = vst [vmem:[#allocation2 + $0x18] sm:$0xff] %v441
    %v444 = vld [vmem:[#allocation2] sm:$0xff]
    %v445 = vld [vmem:[#allocation2 + $0x8] sm:$0xff]
    %v446 = vld [vmem:[#allocation2 + $0x10] sm:$0xff]
    %v447 = vld [vmem:[#allocation2 + $0x18] sm:$0xff]
    %v448 = vpack.c.bf16 %v446, %v444
    %v449 = vpack.c.bf16 %v447, %v445
    %v450 = vld [vmem:[%s7] sm:$0xf]
    %v451 = vld [vmem:[%s7 + $0x4] sm:$0xf]
    %v452 = vld [vmem:[%s7 + $0x8] sm:$0xf]
    %v453 = vld [vmem:[%s7 + $0xc] sm:$0xf]
    %v454 = vld [vmem:[%s7 + $0x10] sm:$0xf]
    %v455 = vld [vmem:[%s7 + $0x14] sm:$0xf]
    %v456 = vld [vmem:[%s7 + $0x18] sm:$0xf]
    %v457 = vld [vmem:[%s7 + $0x1c] sm:$0xf]
    %v458 = vld [vmem:[%s7 + $0x20] sm:$0xf]
    %v459 = vld [vmem:[%s7 + $0x24] sm:$0xf]
    %v460 = vld [vmem:[%s7 + $0x28] sm:$0xf]
    %v461 = vld [vmem:[%s7 + $0x2c] sm:$0xf]
    %v462 = vld [vmem:[%s7 + $0x30] sm:$0xf]
    %v463 = vld [vmem:[%s7 + $0x34] sm:$0xf]
    %v464 = vld [vmem:[%s7 + $0x38] sm:$0xf]
    %v465 = vld [vmem:[%s7 + $0x3c] sm:$0xf]
    %v466 = vld [vmem:[%s7 + $0x40] sm:$0xf]
    %v467 = vld [vmem:[%s7 + $0x44] sm:$0xf]
    %v468 = vld [vmem:[%s7 + $0x48] sm:$0xf]
    %v469 = vld [vmem:[%s7 + $0x4c] sm:$0xf]
    %v470 = vld [vmem:[%s7 + $0x50] sm:$0xf]
    %v471 = vld [vmem:[%s7 + $0x54] sm:$0xf]
    %v472 = vld [vmem:[%s7 + $0x58] sm:$0xf]
    %v473 = vld [vmem:[%s7 + $0x5c] sm:$0xf]
    %v474 = vld [vmem:[%s7 + $0x60] sm:$0xf]
    %v475 = vld [vmem:[%s7 + $0x64] sm:$0xf]
    %v476 = vld [vmem:[%s7 + $0x68] sm:$0xf]
    %v477 = vld [vmem:[%s7 + $0x6c] sm:$0xf]
    %v478 = vld [vmem:[%s7 + $0x70] sm:$0xf]
    %v479 = vld [vmem:[%s7 + $0x74] sm:$0xf]
    %v480 = vld [vmem:[%s7 + $0x78] sm:$0xf]
    %v481 = vld [vmem:[%s7 + $0x7c] sm:$0xf]
    %v482 = vld [vmem:[%s9] sm:$0x1]
    %v484 = vlaneseq
    %v485 = vshrl.u32 %v484, 7
    %v486 = vsub.s32 0, %v485
    %v487 = vrot.slane %v482, %v486
    %v521 = vunpack.c.l.b16 %v450
    %v522 = vunpack.c.l.b16 %v451
    %v523 = vunpack.c.l.b16 %v452
    %v524 = vunpack.c.l.b16 %v453
    %v525 = vunpack.c.l.b16 %v454
    %v526 = vunpack.c.l.b16 %v455
    %v527 = vunpack.c.l.b16 %v456
    %v528 = vunpack.c.l.b16 %v457
    %v529 = vunpack.c.l.b16 %v458
    %v530 = vunpack.c.l.b16 %v459
    %v531 = vunpack.c.l.b16 %v460
    %v532 = vunpack.c.l.b16 %v461
    %v533 = vunpack.c.l.b16 %v462
    %v534 = vunpack.c.l.b16 %v463
    %v535 = vunpack.c.l.b16 %v464
    %v536 = vunpack.c.l.b16 %v465
    %v537 = vunpack.c.l.b16 %v466
    %v538 = vunpack.c.l.b16 %v467
    %v539 = vunpack.c.l.b16 %v468
    %v540 = vunpack.c.l.b16 %v469
    %v541 = vunpack.c.l.b16 %v470
    %v542 = vunpack.c.l.b16 %v471
    %v543 = vunpack.c.l.b16 %v472
    %v544 = vunpack.c.l.b16 %v473
    %v545 = vunpack.c.l.b16 %v474
    %v546 = vunpack.c.l.b16 %v475
    %v547 = vunpack.c.l.b16 %v476
    %v548 = vunpack.c.l.b16 %v477
    %v549 = vunpack.c.l.b16 %v478
    %v550 = vunpack.c.l.b16 %v479
    %v551 = vunpack.c.l.b16 %v480
    %v552 = vunpack.c.l.b16 %v481
    %v553 = vpack.c.b16 %v522, %v521
    %v554 = vpack.c.b16 %v524, %v523
    %v555 = vpack.c.b16 %v526, %v525
    %v556 = vpack.c.b16 %v528, %v527
    %v557 = vpack.c.b16 %v530, %v529
    %v558 = vpack.c.b16 %v532, %v531
    %v559 = vpack.c.b16 %v534, %v533
    %v560 = vpack.c.b16 %v536, %v535
    %v561 = vpack.c.b16 %v538, %v537
    %v562 = vpack.c.b16 %v540, %v539
    %v563 = vpack.c.b16 %v542, %v541
    %v564 = vpack.c.b16 %v544, %v543
    %v565 = vpack.c.b16 %v546, %v545
    %v566 = vpack.c.b16 %v548, %v547
    %v567 = vpack.c.b16 %v550, %v549
    %v568 = vpack.c.b16 %v552, %v551
    %585 = vmatprep.subr.bf16.mxu0 0
    %586 = vmatpush1.bf16.msra.mxu0 %v553
    %587 = vmatprep.subr.bf16.mxu0 0
    %588 = vmatpush1.bf16.msra.mxu0 %v554
    %589 = vmatprep.subr.bf16.mxu0 0
    %590 = vmatpush1.bf16.msra.mxu0 %v555
    %591 = vmatprep.subr.bf16.mxu0 0
    %592 = vmatpush1.bf16.msra.mxu0 %v556
    %593 = vmatprep.subr.bf16.mxu0 0
    %594 = vmatpush1.bf16.msra.mxu0 %v557
    %595 = vmatprep.subr.bf16.mxu0 0
    %596 = vmatpush1.bf16.msra.mxu0 %v558
    %597 = vmatprep.subr.bf16.mxu0 0
    %598 = vmatpush1.bf16.msra.mxu0 %v559
    %599 = vmatprep.subr.bf16.mxu0 0
    %600 = vmatpush1.bf16.msra.mxu0 %v560
    %601 = vmatprep.subr.bf16.mxu0 0
    %602 = vmatpush1.bf16.msra.mxu0 %v561
    %603 = vmatprep.subr.bf16.mxu0 0
    %604 = vmatpush1.bf16.msra.mxu0 %v562
    %605 = vmatprep.subr.bf16.mxu0 0
    %606 = vmatpush1.bf16.msra.mxu0 %v563
    %607 = vmatprep.subr.bf16.mxu0 0
    %608 = vmatpush1.bf16.msra.mxu0 %v564
    %609 = vmatprep.subr.bf16.mxu0 0
    %610 = vmatpush1.bf16.msra.mxu0 %v565
    %611 = vmatprep.subr.bf16.mxu0 0
    %612 = vmatpush1.bf16.msra.mxu0 %v566
    %613 = vmatprep.subr.bf16.mxu0 0
    %614 = vmatpush1.bf16.msra.mxu0 %v567
    %615 = vmatprep.subr.bf16.mxu0 0
    %616 = vmatpush1.bf16.msra.mxu0 %v568
    %617 = vmatprep.mubr.bf16.mxu0 %v449
    %618 = vmatmul.mubr.bf16.gmra.mrb[0].mxu0 %v448
    %v619 = vpop.f32.mrb[0].mxu0
    %v620 = vadd.f32 %v487, %v619
    %v621 = vpop.f32.mrb[0].mxu0
    %v622 = vpop.f32.mrb[0].mxu0
    %v623 = vadd.f32 %v487, %v622
    %v624 = vpop.f32.mrb[0].mxu0
    %625 = vdwg.mxu0
    %v626 = vmax.f32 %v620, 0.0
    %v627 = vmax.f32 %v623, 0.0
    %v628 = vpack.c.bf16 %v627, %v626
    %v630 = vunpack.c.l.b16 %v628
    %v631 = vunpack.c.h.b16 %v628
    %v632 = vpack.c.b16 %v630, %v630
    %v633 = vpack.c.b16 %v631, %v631
    %636 = vst [vmem:[%s10] sm:$0xf] %v632
    %637 = vst [vmem:[%s10 + $0x4] sm:$0xf] %v633
  $region45: #{_forward_core.3} parent=0 // pred_fallthru
    _
  // Predicated region
  $region46: #{_forward_core.3} parent=0 // pred_check
    _
  $region47: #{_forward_core.3} parent=0 // pred_check_branch
    %639 = sbr.rel (0) target = $region49
  $region48: #{_forward_core.3} parent=0 // pred_region
    _
  $region49: #{_forward_core.3} parent=0 // pred_fallthru
    _
  // Predicated region
  $region50: #{_forward_core.3} parent=0 // pred_check
    _
  $region51: #{_forward_core.3} parent=0 // pred_check_branch
    %641 = sbr.rel (0) target = $region53
  $region52: #{_forward_core.3} parent=0 // pred_region
    _
  $region53: #{_forward_core.3} parent=0 // pred_fallthru
    _

// kernel: _forward_core.5
$region0: #{_forward_core.5}
  #allocation0 [shape = 'u32[]', space=smem, size = 0x4, offset = 0x4, fixed_abs, tag = 'smem constant byte address 0x4 - core index']
  #allocation1 [shape = 'u32[144,128]{1,0:T(1,128)}', space=vmem, size = 0x12000, scoped, tag = 'internal scratch']
  %s0 = inlined_call_operand.vmem [shape: bf16[128,256], index: 0, kind: input, shape index: {}]
  %s1 = inlined_call_operand.vmem [shape: bf16[256,128], index: 1, kind: input, shape index: {}]
  %s2 = inlined_call_operand.vmem [shape: f32[1,128], index: 2, kind: input, shape index: {}]
  %s3 = inlined_call_operand.vmem [shape: bf16[128,128], index: 3, kind: output, shape index: {}]
  %s4 = sld [smem:[#allocation0]]
  $region22: #{_forward_core.5} parent=0
    _
  %s6 = ssub.s32 1, %s4
  %s7 = scalar_select 0, %s6, %s4
  // Predicated region
  $region2: #{_forward_core.5} parent=0 // pred_check
    _
  $region3: #{_forward_core.5} parent=0 // pred_check_branch
    %9 = sbr.rel (0) target = $region5
  $region4: #{_forward_core.5} parent=0 // pred_region
    _
  $region5: #{_forward_core.5} parent=0 // pred_fallthru
    _
  // Predicated region
  $region6: #{_forward_core.5} parent=0 // pred_check
    _
  $region7: #{_forward_core.5} parent=0 // pred_check_branch
    %11 = sbr.rel (0) target = $region9
  $region8: #{_forward_core.5} parent=0 // pred_region
    _
  $region9: #{_forward_core.5} parent=0 // pred_fallthru
    _
  // Predicated region
  $region10: #{_forward_core.5} parent=0 // pred_check
    _
  $region11: #{_forward_core.5} parent=0 // pred_check_branch
    %13 = sbr.rel (0) target = $region13
  $region12: #{_forward_core.5} parent=0 // pred_region
    _
  $region13: #{_forward_core.5} parent=0 // pred_fallthru
    _
  %v15 = vld [vmem:[%s0] sm:$0xff]
  %v16 = vld [vmem:[%s0 + $0x8] sm:$0xff]
  %v17 = vld [vmem:[%s0 + $0x10] sm:$0xff]
  %v18 = vld [vmem:[%s0 + $0x18] sm:$0xff]
  %v19 = vld [vmem:[%s0 + $0x20] sm:$0xff]
  %v20 = vld [vmem:[%s0 + $0x28] sm:$0xff]
  %v21 = vld [vmem:[%s0 + $0x30] sm:$0xff]
  %v22 = vld [vmem:[%s0 + $0x38] sm:$0xff]
  %v23 = vld [vmem:[%s0 + $0x40] sm:$0xff]
  %v24 = vld [vmem:[%s0 + $0x48] sm:$0xff]
  %v25 = vld [vmem:[%s0 + $0x50] sm:$0xff]
  %v26 = vld [vmem:[%s0 + $0x58] sm:$0xff]
  %v27 = vld [vmem:[%s0 + $0x60] sm:$0xff]
  %v28 = vld [vmem:[%s0 + $0x68] sm:$0xff]
  %v29 = vld [vmem:[%s0 + $0x70] sm:$0xff]
  %v30 = vld [vmem:[%s0 + $0x78] sm:$0xff]
  %v31 = vld [vmem:[%s1] sm:$0xf]
  %v32 = vld [vmem:[%s1 + $0x4] sm:$0xf]
  %v33 = vld [vmem:[%s1 + $0x8] sm:$0xf]
  %v34 = vld [vmem:[%s1 + $0xc] sm:$0xf]
  %v35 = vld [vmem:[%s1 + $0x10] sm:$0xf]
  %v36 = vld [vmem:[%s1 + $0x14] sm:$0xf]
  %v37 = vld [vmem:[%s1 + $0x18] sm:$0xf]
  %v38 = vld [vmem:[%s1 + $0x1c] sm:$0xf]
  %v39 = vld [vmem:[%s1 + $0x20] sm:$0xf]
  %v40 = vld [vmem:[%s1 + $0x24] sm:$0xf]
  %v41 = vld [vmem:[%s1 + $0x28] sm:$0xf]
  %v42 = vld [vmem:[%s1 + $0x2c] sm:$0xf]
  %v43 = vld [vmem:[%s1 + $0x30] sm:$0xf]
  %v44 = vld [vmem:[%s1 + $0x34] sm:$0xf]
  %v45 = vld [vmem:[%s1 + $0x38] sm:$0xf]
  %v46 = vld [vmem:[%s1 + $0x3c] sm:$0xf]
  %v47 = vld [vmem:[%s1 + $0x40] sm:$0xf]
  %v48 = vld [vmem:[%s1 + $0x44] sm:$0xf]
  %v49 = vld [vmem:[%s1 + $0x48] sm:$0xf]
  %v50 = vld [vmem:[%s1 + $0x4c] sm:$0xf]
  %v51 = vld [vmem:[%s1 + $0x50] sm:$0xf]
  %v52 = vld [vmem:[%s1 + $0x54] sm:$0xf]
  %v53 = vld [vmem:[%s1 + $0x58] sm:$0xf]
  %v54 = vld [vmem:[%s1 + $0x5c] sm:$0xf]
  %v55 = vld [vmem:[%s1 + $0x60] sm:$0xf]
  %v56 = vld [vmem:[%s1 + $0x64] sm:$0xf]
  %v57 = vld [vmem:[%s1 + $0x68] sm:$0xf]
  %v58 = vld [vmem:[%s1 + $0x6c] sm:$0xf]
  %v59 = vld [vmem:[%s1 + $0x70] sm:$0xf]
  %v60 = vld [vmem:[%s1 + $0x74] sm:$0xf]
  %v61 = vld [vmem:[%s1 + $0x78] sm:$0xf]
  %v62 = vld [vmem:[%s1 + $0x7c] sm:$0xf]
  %v63 = vld [vmem:[%s2] sm:$0x1]
  %v65 = vlaneseq
  %v66 = vshrl.u32 %v65, 7
  %v67 = vsub.s32 0, %v66
  %v68 = vrot.slane %v63, %v67
  %v86 = vunpack.c.l.b16 %v15
  %v87 = vunpack.c.h.b16 %v15
  %v88 = vunpack.c.l.b16 %v16
  %v89 = vunpack.c.h.b16 %v16
  %v90 = vunpack.c.l.b16 %v17
  %v91 = vunpack.c.h.b16 %v17
  %v92 = vunpack.c.l.b16 %v18
  %v93 = vunpack.c.h.b16 %v18
  %v94 = vunpack.c.l.b16 %v19
  %v95 = vunpack.c.h.b16 %v19
  %v96 = vunpack.c.l.b16 %v20
  %v97 = vunpack.c.h.b16 %v20
  %v98 = vunpack.c.l.b16 %v21
  %v99 = vunpack.c.h.b16 %v21
  %v100 = vunpack.c.l.b16 %v22
  %v101 = vunpack.c.h.b16 %v22
  %v102 = vunpack.c.l.b16 %v23
  %v103 = vunpack.c.h.b16 %v23
  %v104 = vunpack.c.l.b16 %v24
  %v105 = vunpack.c.h.b16 %v24
  %v106 = vunpack.c.l.b16 %v25
  %v107 = vunpack.c.h.b16 %v25
  %v108 = vunpack.c.l.b16 %v26
  %v109 = vunpack.c.h.b16 %v26
  %v110 = vunpack.c.l.b16 %v27
  %v111 = vunpack.c.h.b16 %v27
  %v112 = vunpack.c.l.b16 %v28
  %v113 = vunpack.c.h.b16 %v28
  %v114 = vunpack.c.l.b16 %v29
  %v115 = vunpack.c.h.b16 %v29
  %v116 = vunpack.c.l.b16 %v30
  %v117 = vunpack.c.h.b16 %v30
  %v118 = vpack.c.b16 %v88, %v86
  %v119 = vpack.c.b16 %v89, %v87
  %v120 = vpack.c.b16 %v92, %v90
  %v121 = vpack.c.b16 %v93, %v91
  %v122 = vpack.c.b16 %v96, %v94
  %v123 = vpack.c.b16 %v97, %v95
  %v124 = vpack.c.b16 %v100, %v98
  %v125 = vpack.c.b16 %v101, %v99
  %v126 = vpack.c.b16 %v104, %v102
  %v127 = vpack.c.b16 %v105, %v103
  %v128 = vpack.c.b16 %v108, %v106
  %v129 = vpack.c.b16 %v109, %v107
  %v130 = vpack.c.b16 %v112, %v110
  %v131 = vpack.c.b16 %v113, %v111
  %v132 = vpack.c.b16 %v116, %v114
  %v133 = vpack.c.b16 %v117, %v115
  %v182 = vunpack.c.l.b16 %v31
  %v183 = vunpack.c.l.b16 %v32
  %v184 = vunpack.c.l.b16 %v33
  %v185 = vunpack.c.l.b16 %v34
  %v186 = vunpack.c.l.b16 %v35
  %v187 = vunpack.c.l.b16 %v36
  %v188 = vunpack.c.l.b16 %v37
  %v189 = vunpack.c.l.b16 %v38
  %v190 = vunpack.c.l.b16 %v39
  %v191 = vunpack.c.l.b16 %v40
  %v192 = vunpack.c.l.b16 %v41
  %v193 = vunpack.c.l.b16 %v42
  %v194 = vunpack.c.l.b16 %v43
  %v195 = vunpack.c.l.b16 %v44
  %v196 = vunpack.c.l.b16 %v45
  %v197 = vunpack.c.l.b16 %v46
  %v198 = vunpack.c.l.b16 %v47
  %v199 = vunpack.c.l.b16 %v48
  %v200 = vunpack.c.l.b16 %v49
  %v201 = vunpack.c.l.b16 %v50
  %v202 = vunpack.c.l.b16 %v51
  %v203 = vunpack.c.l.b16 %v52
  %v204 = vunpack.c.l.b16 %v53
  %v205 = vunpack.c.l.b16 %v54
  %v206 = vunpack.c.l.b16 %v55
  %v207 = vunpack.c.l.b16 %v56
  %v208 = vunpack.c.l.b16 %v57
  %v209 = vunpack.c.l.b16 %v58
  %v210 = vunpack.c.l.b16 %v59
  %v211 = vunpack.c.l.b16 %v60
  %v212 = vunpack.c.l.b16 %v61
  %v213 = vunpack.c.l.b16 %v62
  %v214 = vpack.c.b16 %v183, %v182
  %v215 = vpack.c.b16 %v185, %v184
  %v216 = vpack.c.b16 %v187, %v186
  %v217 = vpack.c.b16 %v189, %v188
  %v218 = vpack.c.b16 %v191, %v190
  %v219 = vpack.c.b16 %v193, %v192
  %v220 = vpack.c.b16 %v195, %v194
  %v221 = vpack.c.b16 %v197, %v196
  %v222 = vpack.c.b16 %v199, %v198
  %v223 = vpack.c.b16 %v201, %v200
  %v224 = vpack.c.b16 %v203, %v202
  %v225 = vpack.c.b16 %v205, %v204
  %v226 = vpack.c.b16 %v207, %v206
  %v227 = vpack.c.b16 %v209, %v208
  %v228 = vpack.c.b16 %v211, %v210
  %v229 = vpack.c.b16 %v213, %v212
  %246 = vmatprep.subr.bf16.mxu0 0
  %247 = vmatpush1.bf16.msra.mxu0 %v214
  %248 = vmatprep.subr.bf16.mxu0 0
  %249 = vmatpush1.bf16.msra.mxu0 %v215
  %250 = vmatprep.subr.bf16.mxu0 0
  %251 = vmatpush1.bf16.msra.mxu0 %v216
  %252 = vmatprep.subr.bf16.mxu0 0
  %253 = vmatpush1.bf16.msra.mxu0 %v217
  %254 = vmatprep.subr.bf16.mxu0 0
  %255 = vmatpush1.bf16.msra.mxu0 %v218
  %256 = vmatprep.subr.bf16.mxu0 0
  %257 = vmatpush1.bf16.msra.mxu0 %v219
  %258 = vmatprep.subr.bf16.mxu0 0
  %259 = vmatpush1.bf16.msra.mxu0 %v220
  %260 = vmatprep.subr.bf16.mxu0 0
  %261 = vmatpush1.bf16.msra.mxu0 %v221
  %262 = vmatprep.subr.bf16.mxu0 0
  %263 = vmatpush1.bf16.msra.mxu0 %v222
  %264 = vmatprep.subr.bf16.mxu0 0
  %265 = vmatpush1.bf16.msra.mxu0 %v223
  %266 = vmatprep.subr.bf16.mxu0 0
  %267 = vmatpush1.bf16.msra.mxu0 %v224
  %268 = vmatprep.subr.bf16.mxu0 0
  %269 = vmatpush1.bf16.msra.mxu0 %v225
  %270 = vmatprep.subr.bf16.mxu0 0
  %271 = vmatpush1.bf16.msra.mxu0 %v226
  %272 = vmatprep.subr.bf16.mxu0 0
  %273 = vmatpush1.bf16.msra.mxu0 %v227
  %274 = vmatprep.subr.bf16.mxu0 0
  %275 = vmatpush1.bf16.msra.mxu0 %v228
  %276 = vmatprep.subr.bf16.mxu0 0
  %277 = vmatpush1.bf16.msra.mxu0 %v229
  %278 = vmatprep.mubr.bf16.mxu0 %v119
  %279 = vmatmul.mubr.bf16.gmra.mrb[0].mxu0 %v118
  %v280 = vpop.f32.mrb[0].mxu0
  %v281 = vadd.f32 %v68, %v280
  %v282 = vpop.f32.mrb[0].mxu0
  %v283 = vpop.f32.mrb[0].mxu0
  %v284 = vadd.f32 %v68, %v283
  %v285 = vpop.f32.mrb[0].mxu0
  %286 = vmatprep.mubr.bf16.mxu0 %v121
  %287 = vmatmul.mubr.bf16.gmra.mrb[0].mxu0 %v120
  %v288 = vpop.f32.mrb[0].mxu0
  %v289 = vadd.f32 %v68, %v288
  %v290 = vpop.f32.mrb[0].mxu0
  %v291 = vpop.f32.mrb[0].mxu0
  %v292 = vadd.f32 %v68, %v291
  %v293 = vpop.f32.mrb[0].mxu0
  %294 = vmatprep.mubr.bf16.mxu0 %v123
  %295 = vmatmul.mubr.bf16.gmra.mrb[0].mxu0 %v122
  %v296 = vpop.f32.mrb[0].mxu0
  %v297 = vadd.f32 %v68, %v296
  %v298 = vpop.f32.mrb[0].mxu0
  %v299 = vpop.f32.mrb[0].mxu0
  %v300 = vadd.f32 %v68, %v299
  %v301 = vpop.f32.mrb[0].mxu0
  %302 = vmatprep.mubr.bf16.mxu0 %v125
  %303 = vmatmul.mubr.bf16.gmra.mrb[0].mxu0 %v124
  %v304 = vpop.f32.mrb[0].mxu0
  %v305 = vadd.f32 %v68, %v304
  %v306 = vpop.f32.mrb[0].mxu0
  %v307 = vpop.f32.mrb[0].mxu0
  %v308 = vadd.f32 %v68, %v307
  %v309 = vpop.f32.mrb[0].mxu0
  %310 = vmatprep.mubr.bf16.mxu0 %v127
  %311 = vmatmul.mubr.bf16.gmra.mrb[0].mxu0 %v126
  %v312 = vpop.f32.mrb[0].mxu0
  %v313 = vadd.f32 %v68, %v312
  %v314 = vpop.f32.mrb[0].mxu0
  %v315 = vpop.f32.mrb[0].mxu0
  %v316 = vadd.f32 %v68, %v315
  %v317 = vpop.f32.mrb[0].mxu0
  %318 = vmatprep.mubr.bf16.mxu0 %v129
  %319 = vmatmul.mubr.bf16.gmra.mrb[0].mxu0 %v128
  %v320 = vpop.f32.mrb[0].mxu0
  %v321 = vadd.f32 %v68, %v320
  %v322 = vpop.f32.mrb[0].mxu0
  %v323 = vpop.f32.mrb[0].mxu0
  %v324 = vadd.f32 %v68, %v323
  %v325 = vpop.f32.mrb[0].mxu0
  %326 = vmatprep.mubr.bf16.mxu0 %v131
  %327 = vmatmul.mubr.bf16.gmra.mrb[0].mxu0 %v130
  %v328 = vpop.f32.mrb[0].mxu0
  %v329 = vadd.f32 %v68, %v328
  %v330 = vpop.f32.mrb[0].mxu0
  %v331 = vpop.f32.mrb[0].mxu0
  %v332 = vadd.f32 %v68, %v331
  %v333 = vpop.f32.mrb[0].mxu0
  %334 = vmatprep.mubr.bf16.mxu0 %v133
  %335 = vmatmul.mubr.bf16.gmra.mrb[0].mxu0 %v132
  %v336 = vpop.f32.mrb[0].mxu0
  %v337 = vadd.f32 %v68, %v336
  %v338 = vpop.f32.mrb[0].mxu0
  %v339 = vpop.f32.mrb[0].mxu0
  %v340 = vadd.f32 %v68, %v339
  %v341 = vpop.f32.mrb[0].mxu0
  %342 = vdwg.mxu0
  %v343 = vpack.c.bf16 %v284, %v281
  %v344 = vpack.c.bf16 %v292, %v289
  %v345 = vpack.c.bf16 %v300, %v297
  %v346 = vpack.c.bf16 %v308, %v305
  %v347 = vpack.c.bf16 %v316, %v313
  %v348 = vpack.c.bf16 %v324, %v321
  %v349 = vpack.c.bf16 %v332, %v329
  %v350 = vpack.c.bf16 %v340, %v337
  %v359 = vunpack.c.l.b16 %v343
  %v360 = vunpack.c.h.b16 %v343
  %v361 = vunpack.c.l.b16 %v344
  %v362 = vunpack.c.h.b16 %v344
  %v363 = vunpack.c.l.b16 %v345
  %v364 = vunpack.c.h.b16 %v345
  %v365 = vunpack.c.l.b16 %v346
  %v366 = vunpack.c.h.b16 %v346
  %v367 = vunpack.c.l.b16 %v347
  %v368 = vunpack.c.h.b16 %v347
  %v369 = vunpack.c.l.b16 %v348
  %v370 = vunpack.c.h.b16 %v348
  %v371 = vunpack.c.l.b16 %v349
  %v372 = vunpack.c.h.b16 %v349
  %v373 = vunpack.c.l.b16 %v350
  %v374 = vunpack.c.h.b16 %v350
  %v375 = vpack.c.b16 %v359, %v359
  %v376 = vpack.c.b16 %v360, %v360
  %v377 = vpack.c.b16 %v361, %v361
  %v378 = vpack.c.b16 %v362, %v362
  %v379 = vpack.c.b16 %v363, %v363
  %v380 = vpack.c.b16 %v364, %v364
  %v381 = vpack.c.b16 %v365, %v365
  %v382 = vpack.c.b16 %v366, %v366
  %v383 = vpack.c.b16 %v367, %v367
  %v384 = vpack.c.b16 %v368, %v368
  %v385 = vpack.c.b16 %v369, %v369
  %v386 = vpack.c.b16 %v370, %v370
  %v387 = vpack.c.b16 %v371, %v371
  %v388 = vpack.c.b16 %v372, %v372
  %v389 = vpack.c.b16 %v373, %v373
  %v390 = vpack.c.b16 %v374, %v374
  %407 = vst [vmem:[%s3] sm:$0xf] %v375
  %408 = vst [vmem:[%s3 + $0x4] sm:$0xf] %v376
  %409 = vst [vmem:[%s3 + $0x8] sm:$0xf] %v377
  %410 = vst [vmem:[%s3 + $0xc] sm:$0xf] %v378
  %411 = vst [vmem:[%s3 + $0x10] sm:$0xf] %v379
  %412 = vst [vmem:[%s3 + $0x14] sm:$0xf] %v380
  %413 = vst [vmem:[%s3 + $0x18] sm:$0xf] %v381
  %414 = vst [vmem:[%s3 + $0x1c] sm:$0xf] %v382
  %415 = vst [vmem:[%s3 + $0x20] sm:$0xf] %v383
  %416 = vst [vmem:[%s3 + $0x24] sm:$0xf] %v384
  %417 = vst [vmem:[%s3 + $0x28] sm:$0xf] %v385
  %418 = vst [vmem:[%s3 + $0x2c] sm:$0xf] %v386
  %419 = vst [vmem:[%s3 + $0x30] sm:$0xf] %v387
  %420 = vst [vmem:[%s3 + $0x34] sm:$0xf] %v388
  %421 = vst [vmem:[%s3 + $0x38] sm:$0xf] %v389
  %422 = vst [vmem:[%s3 + $0x3c] sm:$0xf] %v390
  // Predicated region
  $region14: #{_forward_core.5} parent=0 // pred_check
    _
  $region15: #{_forward_core.5} parent=0 // pred_check_branch
    %424 = sbr.rel (0) target = $region17
  $region16: #{_forward_core.5} parent=0 // pred_region
    _
  $region17: #{_forward_core.5} parent=0 // pred_fallthru
    _
  // Predicated region
  $region18: #{_forward_core.5} parent=0 // pred_check
    _
  $region19: #{_forward_core.5} parent=0 // pred_check_branch
    %426 = sbr.rel (0) target = $region21
  $region20: #{_forward_core.5} parent=0 // pred_region
    _
  $region21: #{_forward_core.5} parent=0 // pred_fallthru
    _

</llo_original>
